<compile_context>
chip_gen: v5e
topology: v5e:2x2
jax: 0.10.0
libtpu: 0.0.40
codegen_flags: <defaults>
</compile_context>

<pallas_src>
import functools
import math

import jax
import jax.numpy as jnp
from jax.experimental import pallas as pl
from jax.experimental.pallas import tpu as pltpu


# ----------------------------- in-kernel helpers -----------------------------


def _log_softmax(x):
    m = jnp.max(x, axis=-1, keepdims=True)
    z = x - m
    return z - jnp.log(jnp.sum(jnp.exp(z), axis=-1, keepdims=True))


def _sum_all(x):
    # (m, n) -> (1, 1) without rank-0 intermediates.
    return jnp.sum(jnp.sum(x, axis=-1, keepdims=True), axis=0, keepdims=True)


def _l2norm(x):
    # row-wise L2 normalize; rsqrt(max(nsq,1e-24)) == 1/max(norm,1e-12) (torch eps).
    nsq = jnp.sum(x * x, axis=-1, keepdims=True)
    return x * jax.lax.rsqrt(jnp.maximum(nsq, 1e-24))


def _gram(x):
    # X @ X.T with f32 accumulation.
    return jax.lax.dot_general(
        x, x, (((1,), (1,)), ((), ())), preferred_element_type=jnp.float32
    )


def _multisim(s, pos_mask, neg_mask, *, pos_w, neg_w, margin, thresh):
    # Multisimilarity loss from an (already cosine) similarity matrix.
    big = jnp.float32(1e30)
    min_pos = jnp.min(jnp.where(pos_mask, s, big), axis=-1, keepdims=True)
    max_neg = jnp.max(jnp.where(neg_mask, s, -big), axis=-1, keepdims=True)

    neg_sel = jnp.logical_and(neg_mask, (s + margin) > min_pos)
    pos_sel = jnp.logical_and(pos_mask, (s - margin) < max_neg)

    pos_e = jnp.where(pos_sel, jnp.exp(-pos_w * (s - thresh)), 0.0)
    neg_e = jnp.where(neg_sel, jnp.exp(neg_w * (s - thresh)), 0.0)
    pos_term = jnp.log(1.0 + jnp.sum(pos_e, axis=-1, keepdims=True)) / pos_w
    neg_term = jnp.log(1.0 + jnp.sum(neg_e, axis=-1, keepdims=True)) / neg_w

    has_pos = jnp.sum(pos_sel.astype(jnp.float32), axis=-1, keepdims=True) > 0
    has_neg = jnp.sum(neg_sel.astype(jnp.float32), axis=-1, keepdims=True) > 0
    valid = jnp.logical_and(has_pos, has_neg).astype(jnp.float32)

    loss_sum = _sum_all(valid * (pos_term + neg_term))
    n_valid = _sum_all(valid)
    return jnp.where(n_valid > 0, loss_sum / jnp.maximum(n_valid, 1.0), 0.0)


# ------------------------------- fused kernel --------------------------------


def _s2sd_kernel(lab_col_ref, lab_row_ref, batch_ref, pooled_ref,
                 w1_ref, b1_ref, w2_ref, b2_ref, o_ref, h_acc, gram_acc, *,
                 temp, match_feats_active, pos_w, neg_w, margin, thresh):
    hd = pl.program_id(0)            # head axis ('parallel')
    k = pl.program_id(1)             # f_dim K axis ('arbitrary')
    n_k = pl.num_programs(1)
    bs = batch_ref.shape[0]

    # --- K-tiled first Linear: h_acc += pooled_k @ W1_k (bf16 operands, f32 acc) ---
    @pl.when(k == 0)
    def _():
        h_acc[...] = jnp.zeros_like(h_acc)

    pooled_k = pooled_ref[...]                                  # (bs, tk) f32
    h_acc[...] += jnp.dot(pooled_k.astype(jnp.bfloat16), w1_ref[...],
                          preferred_element_type=jnp.float32)

    # --- feature-KL Gram accumulated over the same K tiles (head 0 only) ---
    if match_feats_active:
        @pl.when(hd == 0)
        def _():
            @pl.when(k == 0)
            def _():
                gram_acc[...] = jnp.zeros_like(gram_acc)
            gram_acc[...] += _gram(pooled_k)

    # --- everything else only at the last K step ---
    @pl.when(k == n_k - 1)
    def _():
        # label / eye masks: one broadcast compare (no unrolled scalar loop)
        row_i = jax.lax.broadcasted_iota(jnp.int32, (bs, bs), 0)
        col_j = jax.lax.broadcasted_iota(jnp.int32, (bs, bs), 1)
        eye = row_i == col_j
        same = lab_col_ref[...] == lab_row_ref[...]             # (bs,1)==(1,bs)
        pos_mask = jnp.logical_and(same, jnp.logical_not(eye))
        neg_mask = jnp.logical_not(same)
        msim = functools.partial(_multisim, pos_mask=pos_mask, neg_mask=neg_mask,
                                 pos_w=pos_w, neg_w=neg_w, margin=margin,
                                 thresh=thresh)

        # source branch: normalize -> smat; log-softmax hoisted for every KL term
        src_smat = _gram(_l2norm(batch_ref[...]))
        source_loss = msim(src_smat)
        log_p_src = _log_softmax(src_smat / temp)

        def kl_against_source(t_smat):
            # F.kl_div(log_softmax(src/T), softmax(t/T), 'sum') * T^2 / bs
            log_p_t = _log_softmax(t_smat / temp)
            p_t = jnp.exp(log_p_t)
            return _sum_all(p_t * (log_p_t - log_p_src)) * (temp * temp) / float(bs)

        # target head MLP tail: ReLU -> Linear (bf16 operands) -> normalize -> smat
        h = jnp.maximum(h_acc[...] + b1_ref[...], 0.0)
        t_emb = jnp.dot(h.astype(jnp.bfloat16), w2_ref[...],
                        preferred_element_type=jnp.float32) + b2_ref[...]
        t_smat = _gram(_l2norm(t_emb))
        target_loss = msim(t_smat)
        kl_head = kl_against_source(t_smat)      # .detach() is a no-op in fwd

        lane = jax.lax.broadcasted_iota(jnp.int32, o_ref.shape, len(o_ref.shape) - 1)
        res = (jnp.where(lane == 0, target_loss, 0.0)
               + jnp.where(lane == 1, kl_head, 0.0)
               + jnp.where(lane == 2, source_loss, 0.0))
        o_ref[...] = res

        if match_feats_active:
            @pl.when(hd == 0)
            def _():
                # normalized pooled-feature smat from the accumulated Gram matrix:
                # smat[i,j] = G_ij / (max(||x_i||,eps) * max(||x_j||,eps))
                g = gram_acc[...]
                diag = jnp.where(eye, g, 0.0)
                diag_col = jnp.sum(diag, axis=-1, keepdims=True)   # (bs,1)
                diag_row = jnp.sum(diag, axis=0, keepdims=True)    # (1,bs)
                inv_c = jax.lax.rsqrt(jnp.maximum(diag_col, 1e-24))
                inv_r = jax.lax.rsqrt(jnp.maximum(diag_row, 1e-24))
                feat_smat = g * inv_c * inv_r
                feat_kl = kl_against_source(feat_smat)
                o_ref[...] = res + jnp.where(lane == 3, feat_kl, 0.0)


# ----------------------------- S2SD forward wrapper ---------------------------


def s2sd_forward(batch, labels, batch_features, avg_batch_features, target_net_params,
                 *, T, w, feat_w, pool_aggr, match_feats, iter_count, max_feat_iter):
    bs, embed_dim = batch.shape
    n_heads = len(target_net_params)
    f_dim = target_net_params[0][0].shape[0]
    t_max = max(p[2].shape[1] for p in target_net_params)
    t_pad = ((t_max + 127) // 128) * 128          # lane-tile aligned per-head width

    # K tile for the first Linear (streams W1 / overlaps DMA with MXU).
    tk = f_dim
    for cand in (512, 256, 128):
        if f_dim % cand == 0:
            tk = cand
            break
    n_k = f_dim // tk

    # TODO(synk): cache these stacked/padded bf16 weights across training steps
    # instead of rebuilding them every forward call.
    w1_l, b1_l, w2_l, b2_l = [], [], [], []
    for (w1, b1, w2, b2) in target_net_params:
        td = w2.shape[1]
        pad = t_pad - td
        w1_l.append(jnp.pad(w1, ((0, 0), (0, pad))))
        b1_l.append(jnp.pad(b1, ((0, 0), (0, pad))))
        w2_l.append(jnp.pad(w2, ((0, pad), (0, pad))))
        b2_l.append(jnp.pad(b2, ((0, 0), (0, pad))))
    w1_s = jnp.stack(w1_l).astype(jnp.bfloat16)   # (n_heads, f_dim, t_pad)
    b1_s = jnp.stack(b1_l).astype(jnp.float32)    # (n_heads, 1, t_pad)
    w2_s = jnp.stack(w2_l).astype(jnp.bfloat16)   # (n_heads, t_pad, t_pad)
    b2_s = jnp.stack(b2_l).astype(jnp.float32)    # (n_heads, 1, t_pad)

    # Pooling in plain XLA on NCHW (tiny output); avoids transposing the full map.
    if pool_aggr:
        pooled = (jnp.mean(batch_features, axis=(2, 3))
                  + jnp.max(batch_features, axis=(2, 3))).astype(jnp.float32)
    else:
        pooled = avg_batch_features.reshape(bs, -1).astype(jnp.float32)

    labels_i32 = labels.astype(jnp.int32)
    lab_col = labels_i32.reshape(bs, 1)
    lab_row = labels_i32.reshape(1, bs)

    match_feats_active = bool(match_feats and iter_count >= max_feat_iter)

    kernel = functools.partial(
        _s2sd_kernel, temp=float(T), match_feats_active=match_feats_active,
        pos_w=2.0, neg_w=40.0, margin=0.1, thresh=0.5)

    sq = pl.Squeezed()
    in_specs = [
        pl.BlockSpec((bs, 1), lambda hd, k: (0, 0)),                 # labels (col)
        pl.BlockSpec((1, bs), lambda hd, k: (0, 0)),                 # labels (row)
        pl.BlockSpec((bs, embed_dim), lambda hd, k: (0, 0)),         # embeddings
        pl.BlockSpec((bs, tk), lambda hd, k: (0, k)),                # pooled K-slice
        pl.BlockSpec((sq, tk, t_pad), lambda hd, k: (hd, k, 0)),     # W1 head/K slice
        pl.BlockSpec((sq, 1, t_pad), lambda hd, k: (hd, 0, 0)),      # b1 per head
        pl.BlockSpec((sq, t_pad, t_pad), lambda hd, k: (hd, 0, 0)),  # W2 per head
        pl.BlockSpec((sq, 1, t_pad), lambda hd, k: (hd, 0, 0)),      # b2 per head
    ]
    out_spec = pl.BlockSpec((sq, 8, 128), lambda hd, k: (hd, 0, 0))
    scratch_shapes = [
        pltpu.VMEM((bs, t_pad), jnp.float32),   # MLP hidden accumulator
        pltpu.VMEM((bs, bs), jnp.float32),      # pooled-feature Gram accumulator
    ]

    # vmem limit from the chosen tiles, ~25% headroom (double-buffered inputs).
    def _pb(shape, dtype):
        s = list(shape)
        s[-1] = ((s[-1] + 127) // 128) * 128
        if len(s) >= 2:
            s[-2] = ((s[-2] + 7) // 8) * 8
        return math.prod(s) * jnp.dtype(dtype).itemsize

    blk_bytes = (_pb((bs, 1), jnp.int32) + _pb((1, bs), jnp.int32)
                 + _pb((bs, embed_dim), jnp.float32)
                 + _pb((bs, tk), jnp.float32)
                 + _pb((tk, t_pad), jnp.bfloat16)
                 + 2 * _pb((1, t_pad), jnp.float32)
                 + _pb((t_pad, t_pad), jnp.bfloat16)
                 + _pb((8, 128), jnp.float32))
    scratch_bytes = _pb((bs, t_pad), jnp.float32) + _pb((bs, bs), jnp.float32)
    vmem_limit = int(2 * blk_bytes * 1.25 + scratch_bytes) + (2 << 20)
    vmem_limit = max(8 << 20, min(vmem_limit, 64 << 20))

    out = pl.pallas_call(
        kernel,
        out_shape=jax.ShapeDtypeStruct((n_heads, 8, 128), jnp.float32),
        grid=(n_heads, n_k),
        in_specs=in_specs,
        out_specs=out_spec,
        scratch_shapes=scratch_shapes,
        compiler_params=pltpu.CompilerParams(
            dimension_semantics=("parallel", "arbitrary"),
            vmem_limit_bytes=vmem_limit),
    )(lab_col, lab_row, batch, pooled, w1_s, b1_s, w2_s, b2_s)

    # Tiny scalar combine in plain JAX (per-head partials -> final S2SD loss).
    target_mean = jnp.mean(out[:, 0, 0])
    kl_mean = jnp.mean(out[:, 0, 1])
    source_loss = out[0, 0, 2]
    loss = (target_mean + source_loss) / 2.0 + float(w) * kl_mean
    if match_feats_active:
        loss = loss + float(feat_w) * out[0, 0, 3]
    return loss


# --------------------------------- main ---------------------------------------


if __name__ == "__main__":
    key = jax.random.PRNGKey(0)
    bs, embed_dim, f_dim, h_sp, w_sp = 8, 32, 64, 4, 4
    target_dims = (32, 64)

    keys = jax.random.split(key, 2 + 4 * len(target_dims))
    batch = jax.random.normal(keys[0], (bs, embed_dim), jnp.float32)
    labels = jnp.array([0, 0, 1, 1, 2, 2, 3, 3], jnp.int32)
    batch_features = jax.random.normal(keys[1], (bs, f_dim, h_sp, w_sp), jnp.float32)  # NCHW
    avg_batch_features = jnp.mean(batch_features, axis=(2, 3))

    # Deterministic target-net params (torch.nn.Linear default uniform init).
    target_net_params = []
    ki = 2
    for t_dim in target_dims:
        lim1 = 1.0 / math.sqrt(f_dim)
        w1 = jax.random.uniform(keys[ki], (f_dim, t_dim), jnp.float32, -lim1, lim1); ki += 1
        b1 = jax.random.uniform(keys[ki], (1, t_dim), jnp.float32, -lim1, lim1); ki += 1
        lim2 = 1.0 / math.sqrt(t_dim)
        w2 = jax.random.uniform(keys[ki], (t_dim, t_dim), jnp.float32, -lim2, lim2); ki += 1
        b2 = jax.random.uniform(keys[ki], (1, t_dim), jnp.float32, -lim2, lim2); ki += 1
        target_net_params.append((w1, b1, w2, b2))

    loss = s2sd_forward(
        batch, labels, batch_features, avg_batch_features, target_net_params,
        T=1.0, w=50.0, feat_w=50.0, pool_aggr=True,
        match_feats=True, iter_count=0, max_feat_iter=0,
    )
    jax.block_until_ready(loss)
    print("KERNEL_OK")
</pallas_src>

<mosaic_0001>
module attributes {stable_mosaic.version = 11 : i64} {
  func.func @_s2sd_kernel(%arg0: i32, %arg1: i32, %arg2: memref<8x1xi32, #tpu.memory_space<vmem>>, %arg3: memref<1x8xi32, #tpu.memory_space<vmem>>, %arg4: memref<8x32xf32, #tpu.memory_space<vmem>>, %arg5: memref<8x64xf32, #tpu.memory_space<vmem>>, %arg6: memref<1x64x128xbf16, #tpu.memory_space<vmem>>, %arg7: memref<1x1x128xf32, #tpu.memory_space<vmem>>, %arg8: memref<1x128x128xbf16, #tpu.memory_space<vmem>>, %arg9: memref<1x1x128xf32, #tpu.memory_space<vmem>>, %arg10: memref<1x8x128xf32, #tpu.memory_space<vmem>>, %arg11: memref<8x128xf32, #tpu.memory_space<vmem>>, %arg12: memref<8x8xf32, #tpu.memory_space<vmem>>) attributes {dimension_semantics = [#tpu.dimension_semantics<parallel>, #tpu.dimension_semantics<arbitrary>], iteration_bounds = array<i64: 2, 1>, scalar_prefetch = 0 : i64, scratch_operands = 2 : i64, tpu.core_type = #tpu.core_type<tc>, window_params = [{pipeline_mode = #tpu.pipeline_mode<synchronous>, transform_indices = @transform_0, window_bounds = array<i64: 8, 1>}, {pipeline_mode = #tpu.pipeline_mode<synchronous>, transform_indices = @transform_1, window_bounds = array<i64: 1, 8>}, {pipeline_mode = #tpu.pipeline_mode<synchronous>, transform_indices = @transform_2, window_bounds = array<i64: 8, 32>}, {transform_indices = @transform_3, window_bounds = array<i64: 8, 64>}, {transform_indices = @transform_4, window_bounds = array<i64: 1, 64, 128>}, {transform_indices = @transform_5, window_bounds = array<i64: 1, 1, 128>}, {transform_indices = @transform_6, window_bounds = array<i64: 1, 128, 128>}, {transform_indices = @transform_7, window_bounds = array<i64: 1, 1, 128>}, {transform_indices = @transform_8, window_bounds = array<i64: 1, 8, 128>}]} {
    %c0_i32 = arith.constant 0 : i32
    %0 = arith.cmpi eq, %arg1, %c0_i32 : i32
    %1 = arith.extui %0 : i1 to i32
    %c0_i32_0 = arith.constant 0 : i32
    %2 = arith.cmpi ne, %1, %c0_i32_0 : i32
    scf.if %2 {
      %cst_13 = arith.constant 0.000000e+00 : f32
      %17 = vector.broadcast %cst_13 : f32 to vector<8x128xf32>
      %c0_14 = arith.constant 0 : index
      %c0_15 = arith.constant 0 : index
      %18 = vector.load %arg11[%c0_14, %c0_15] : memref<8x128xf32, #tpu.memory_space<vmem>>, vector<8x128xf32>
      tpu.vector_store %arg11[%c0_14, %c0_15], %17 {strides = array<i32>} : memref<8x128xf32, #tpu.memory_space<vmem>>, vector<8x128xf32>,
    } else {
    }
    %c0 = arith.constant 0 : index
    %c0_1 = arith.constant 0 : index
    %3 = vector.load %arg5[%c0, %c0_1] : memref<8x64xf32, #tpu.memory_space<vmem>>, vector<8x64xf32>
    %c0_2 = arith.constant 0 : index
    %c0_3 = arith.constant 0 : index
    %4 = vector.load %arg11[%c0_2, %c0_3] : memref<8x128xf32, #tpu.memory_space<vmem>>, vector<8x128xf32>
    %5 = arith.truncf %3 : vector<8x64xf32> to vector<8x64xbf16>
    %c0_4 = arith.constant 0 : index
    %c0_5 = arith.constant 0 : index
    %c0_6 = arith.constant 0 : index
    %6 = vector.load %arg6[%c0_4, %c0_5, %c0_6] : memref<1x64x128xbf16, #tpu.memory_space<vmem>>, vector<1x64x128xbf16>
    %7 = vector.shape_cast %6 : vector<1x64x128xbf16> to vector<64x128xbf16>
    %cst = arith.constant dense<0.000000e+00> : vector<8x128xf32>
    %8 = tpu.matmul %5, %7, %cst {dimension_numbers = #tpu.dot_dimension_numbers<[1], [0], [0], [1], [0, 0, 1, 1], [], []>} : vector<8x64xbf16>, vector<64x128xbf16>, vector<8x128xf32> -> vector<8x128xf32>
    %9 = arith.addf %4, %8 : vector<8x128xf32>
    %c0_7 = arith.constant 0 : index
    %c0_8 = arith.constant 0 : index
    %10 = vector.load %arg11[%c0_7, %c0_8] : memref<8x128xf32, #tpu.memory_space<vmem>>, vector<8x128xf32>
    tpu.vector_store %arg11[%c0_7, %c0_8], %9 {strides = array<i32>} : memref<8x128xf32, #tpu.memory_space<vmem>>, vector<8x128xf32>,
    %c0_i32_9 = arith.constant 0 : i32
    %11 = arith.cmpi eq, %arg0, %c0_i32_9 : i32
    %12 = arith.extui %11 : i1 to i32
    %c0_i32_10 = arith.constant 0 : i32
    %13 = arith.cmpi ne, %12, %c0_i32_10 : i32
    scf.if %13 {
      %c0_i32_13 = arith.constant 0 : i32
      %17 = arith.cmpi eq, %arg1, %c0_i32_13 : i32
      %18 = arith.extui %17 : i1 to i32
      %c0_i32_14 = arith.constant 0 : i32
      %19 = arith.cmpi ne, %18, %c0_i32_14 : i32
      scf.if %19 {
        %cst_20 = arith.constant 0.000000e+00 : f32
        %24 = vector.broadcast %cst_20 : f32 to vector<8x8xf32>
        %c0_21 = arith.constant 0 : index
        %c0_22 = arith.constant 0 : index
        %25 = vector.load %arg12[%c0_21, %c0_22] : memref<8x8xf32, #tpu.memory_space<vmem>>, vector<8x8xf32>
        tpu.vector_store %arg12[%c0_21, %c0_22], %24 {strides = array<i32>} : memref<8x8xf32, #tpu.memory_space<vmem>>, vector<8x8xf32>,
      } else {
      }
      %c0_15 = arith.constant 0 : index
      %c0_16 = arith.constant 0 : index
      %20 = vector.load %arg12[%c0_15, %c0_16] : memref<8x8xf32, #tpu.memory_space<vmem>>, vector<8x8xf32>
      %cst_17 = arith.constant dense<0.000000e+00> : vector<8x8xf32>
      %21 = tpu.matmul %3, %3, %cst_17 {dimension_numbers = #tpu.dot_dimension_numbers<[1], [1], [0], [0], [0, 0, 1, 0], [], []>} : vector<8x64xf32>, vector<8x64xf32>, vector<8x8xf32> -> vector<8x8xf32>
      %22 = arith.addf %20, %21 : vector<8x8xf32>
      %c0_18 = arith.constant 0 : index
      %c0_19 = arith.constant 0 : index
      %23 = vector.load %arg12[%c0_18, %c0_19] : memref<8x8xf32, #tpu.memory_space<vmem>>, vector<8x8xf32>
      tpu.vector_store %arg12[%c0_18, %c0_19], %22 {strides = array<i32>} : memref<8x8xf32, #tpu.memory_space<vmem>>, vector<8x8xf32>,
    } else {
    }
    %c0_i32_11 = arith.constant 0 : i32
    %14 = arith.cmpi eq, %arg1, %c0_i32_11 : i32
    %15 = arith.extui %14 : i1 to i32
    %c0_i32_12 = arith.constant 0 : i32
    %16 = arith.cmpi ne, %15, %c0_i32_12 : i32
    scf.if %16 {
      %17 = tpu.iota {dimensions = array<i32: 0>} : vector<8x8xi32>
      %18 = tpu.iota {dimensions = array<i32: 1>} : vector<8x8xi32>
      %19 = arith.cmpi eq, %17, %18 : vector<8x8xi32>
      %c0_13 = arith.constant 0 : index
      %c0_14 = arith.constant 0 : index
      %20 = vector.load %arg2[%c0_13, %c0_14] : memref<8x1xi32, #tpu.memory_space<vmem>>, vector<8x1xi32>
      %c0_15 = arith.constant 0 : index
      %c0_16 = arith.constant 0 : index
      %21 = vector.load %arg3[%c0_15, %c0_16] : memref<1x8xi32, #tpu.memory_space<vmem>>, vector<1x8xi32>
      %22 = vector.broadcast %20 : vector<8x1xi32> to vector<8x8xi32>
      %23 = vector.broadcast %21 : vector<1x8xi32> to vector<8x8xi32>
      %24 = arith.cmpi eq, %22, %23 : vector<8x8xi32>
      %cst_17 = arith.constant dense<true> : vector<8x8xi1>
      %25 = arith.xori %19, %cst_17 : vector<8x8xi1>
      %26 = arith.andi %24, %25 : vector<8x8xi1>
      %cst_18 = arith.constant dense<true> : vector<8x8xi1>
      %27 = arith.xori %24, %cst_18 : vector<8x8xi1>
      %c0_19 = arith.constant 0 : index
      %c0_20 = arith.constant 0 : index
      %28 = vector.load %arg4[%c0_19, %c0_20] : memref<8x32xf32, #tpu.memory_space<vmem>>, vector<8x32xf32>
      %29 = arith.mulf %28, %28 : vector<8x32xf32>
      %cst_21 = arith.constant dense<0.000000e+00> : vector<8xf32>
      %30 = vector.multi_reduction <add>, %29, %cst_21 [1] : vector<8x32xf32> to vector<8xf32>
      %31 = vector.shape_cast %30 : vector<8xf32> to vector<8x1xf32>
      %cst_22 = arith.constant 1.000000e-24 : f32
      %32 = vector.broadcast %cst_22 : f32 to vector<8x1xf32>
      %33 = arith.maximumf %31, %32 : vector<8x1xf32>
      %34 = math.rsqrt %33 : vector<8x1xf32>
      %35 = vector.broadcast %34 : vector<8x1xf32> to vector<8x32xf32>
      %36 = arith.mulf %28, %35 : vector<8x32xf32>
      %cst_23 = arith.constant dense<0.000000e+00> : vector<8x8xf32>
      %37 = tpu.matmul %36, %36, %cst_23 {dimension_numbers = #tpu.dot_dimension_numbers<[1], [1], [0], [0], [0, 0, 1, 0], [], []>} : vector<8x32xf32>, vector<8x32xf32>, vector<8x8xf32> -> vector<8x8xf32>
      %cst_24 = arith.constant 1.000000e+30 : f32
      %38 = vector.broadcast %cst_24 : f32 to vector<8x8xf32>
      %39 = arith.select %26, %37, %38 : vector<8x8xi1>, vector<8x8xf32>
      %cst_25 = arith.constant dense<0x7F800000> : vector<8xf32>
      %40 = vector.multi_reduction <minimumf>, %39, %cst_25 [1] : vector<8x8xf32> to vector<8xf32>
      %41 = vector.shape_cast %40 : vector<8xf32> to vector<8x1xf32>
      %cst_26 = arith.constant 0.000000e+00 : f32
      %cst_27 = arith.constant 1.000000e+30 : f32
      %42 = arith.subf %cst_26, %cst_27 : f32
      %43 = vector.broadcast %42 : f32 to vector<8x8xf32>
      %44 = arith.select %27, %37, %43 : vector<8x8xi1>, vector<8x8xf32>
      %cst_28 = arith.constant dense<0xFF800000> : vector<8xf32>
      %45 = vector.multi_reduction <maximumf>, %44, %cst_28 [1] : vector<8x8xf32> to vector<8xf32>
      %46 = vector.shape_cast %45 : vector<8xf32> to vector<8x1xf32>
      %cst_29 = arith.constant 1.000000e-01 : f32
      %47 = vector.broadcast %cst_29 : f32 to vector<8x8xf32>
      %48 = arith.addf %37, %47 : vector<8x8xf32>
      %49 = vector.broadcast %41 : vector<8x1xf32> to vector<8x8xf32>
      %50 = arith.cmpf ogt, %48, %49 : vector<8x8xf32>
      %51 = arith.andi %27, %50 : vector<8x8xi1>
      %cst_30 = arith.constant 1.000000e-01 : f32
      %52 = vector.broadcast %cst_30 : f32 to vector<8x8xf32>
      %53 = arith.subf %37, %52 : vector<8x8xf32>
      %54 = vector.broadcast %46 : vector<8x1xf32> to vector<8x8xf32>
      %55 = arith.cmpf olt, %53, %54 : vector<8x8xf32>
      %56 = arith.andi %26, %55 : vector<8x8xi1>
      %cst_31 = arith.constant 5.000000e-01 : f32
      %57 = vector.broadcast %cst_31 : f32 to vector<8x8xf32>
      %58 = arith.subf %37, %57 : vector<8x8xf32>
      %cst_32 = arith.constant -2.000000e+00 : f32
      %59 = vector.broadcast %cst_32 : f32 to vector<8x8xf32>
      %60 = arith.mulf %59, %58 : vector<8x8xf32>
      %61 = math.exp %60 : vector<8x8xf32>
      %cst_33 = arith.constant 0.000000e+00 : f32
      %62 = vector.broadcast %cst_33 : f32 to vector<8x8xf32>
      %63 = arith.select %56, %61, %62 : vector<8x8xi1>, vector<8x8xf32>
      %cst_34 = arith.constant 5.000000e-01 : f32
      %64 = vector.broadcast %cst_34 : f32 to vector<8x8xf32>
      %65 = arith.subf %37, %64 : vector<8x8xf32>
      %cst_35 = arith.constant 4.000000e+01 : f32
      %66 = vector.broadcast %cst_35 : f32 to vector<8x8xf32>
      %67 = arith.mulf %66, %65 : vector<8x8xf32>
      %68 = math.exp %67 : vector<8x8xf32>
      %cst_36 = arith.constant 0.000000e+00 : f32
      %69 = vector.broadcast %cst_36 : f32 to vector<8x8xf32>
      %70 = arith.select %51, %68, %69 : vector<8x8xi1>, vector<8x8xf32>
      %cst_37 = arith.constant dense<0.000000e+00> : vector<8xf32>
      %71 = vector.multi_reduction <add>, %63, %cst_37 [1] : vector<8x8xf32> to vector<8xf32>
      %72 = vector.shape_cast %71 : vector<8xf32> to vector<8x1xf32>
      %cst_38 = arith.constant 1.000000e+00 : f32
      %73 = vector.broadcast %cst_38 : f32 to vector<8x1xf32>
      %74 = arith.addf %73, %72 : vector<8x1xf32>
      %75 = math.log %74 : vector<8x1xf32>
      %cst_39 = arith.constant 2.000000e+00 : f32
      %76 = vector.broadcast %cst_39 : f32 to vector<8x1xf32>
      %77 = arith.divf %75, %76 : vector<8x1xf32>
      %cst_40 = arith.constant dense<0.000000e+00> : vector<8xf32>
      %78 = vector.multi_reduction <add>, %70, %cst_40 [1] : vector<8x8xf32> to vector<8xf32>
      %79 = vector.shape_cast %78 : vector<8xf32> to vector<8x1xf32>
      %cst_41 = arith.constant 1.000000e+00 : f32
      %80 = vector.broadcast %cst_41 : f32 to vector<8x1xf32>
      %81 = arith.addf %80, %79 : vector<8x1xf32>
      %82 = math.log %81 : vector<8x1xf32>
      %cst_42 = arith.constant 4.000000e+01 : f32
      %83 = vector.broadcast %cst_42 : f32 to vector<8x1xf32>
      %84 = arith.divf %82, %83 : vector<8x1xf32>
      %85 = arith.extui %56 : vector<8x8xi1> to vector<8x8xi32>
      %86 = arith.sitofp %85 : vector<8x8xi32> to vector<8x8xf32>
      %cst_43 = arith.constant dense<0.000000e+00> : vector<8xf32>
      %87 = vector.multi_reduction <add>, %86, %cst_43 [1] : vector<8x8xf32> to vector<8xf32>
      %88 = vector.shape_cast %87 : vector<8xf32> to vector<8x1xf32>
      %cst_44 = arith.constant 0.000000e+00 : f32
      %89 = vector.broadcast %cst_44 : f32 to vector<8x1xf32>
      %90 = arith.cmpf ogt, %88, %89 : vector<8x1xf32>
      %91 = arith.extui %51 : vector<8x8xi1> to vector<8x8xi32>
      %92 = arith.sitofp %91 : vector<8x8xi32> to vector<8x8xf32>
      %cst_45 = arith.constant dense<0.000000e+00> : vector<8xf32>
      %93 = vector.multi_reduction <add>, %92, %cst_45 [1] : vector<8x8xf32> to vector<8xf32>
      %94 = vector.shape_cast %93 : vector<8xf32> to vector<8x1xf32>
      %cst_46 = arith.constant 0.000000e+00 : f32
      %95 = vector.broadcast %cst_46 : f32 to vector<8x1xf32>
      %96 = arith.cmpf ogt, %94, %95 : vector<8x1xf32>
      %97 = arith.andi %90, %96 : vector<8x1xi1>
      %98 = arith.extui %97 : vector<8x1xi1> to vector<8x1xi32>
      %99 = arith.sitofp %98 : vector<8x1xi32> to vector<8x1xf32>
      %100 = arith.addf %77, %84 : vector<8x1xf32>
      %101 = arith.mulf %99, %100 : vector<8x1xf32>
      %cst_47 = arith.constant dense<0.000000e+00> : vector<8xf32>
      %102 = vector.multi_reduction <add>, %101, %cst_47 [1] : vector<8x1xf32> to vector<8xf32>
      %103 = vector.shape_cast %102 : vector<8xf32> to vector<8x1xf32>
      %cst_48 = arith.constant dense<0.000000e+00> : vector<1xf32>
      %104 = vector.multi_reduction <add>, %103, %cst_48 [0] : vector<8x1xf32> to vector<1xf32>
      %105 = vector.shape_cast %104 : vector<1xf32> to vector<1x1xf32>
      %cst_49 = arith.constant dense<0.000000e+00> : vector<8xf32>
      %106 = vector.multi_reduction <add>, %99, %cst_49 [1] : vector<8x1xf32> to vector<8xf32>
      %107 = vector.shape_cast %106 : vector<8xf32> to vector<8x1xf32>
      %cst_50 = arith.constant dense<0.000000e+00> : vector<1xf32>
      %108 = vector.multi_reduction <add>, %107, %cst_50 [0] : vector<8x1xf32> to vector<1xf32>
      %109 = vector.shape_cast %108 : vector<1xf32> to vector<1x1xf32>
      %cst_51 = arith.constant 0.000000e+00 : f32
      %110 = vector.broadcast %cst_51 : f32 to vector<1x1xf32>
      %111 = arith.cmpf ogt, %109, %110 : vector<1x1xf32>
      %cst_52 = arith.constant 1.000000e+00 : f32
      %112 = vector.broadcast %cst_52 : f32 to vector<1x1xf32>
      %113 = arith.maximumf %109, %112 : vector<1x1xf32>
      %114 = arith.divf %105, %113 : vector<1x1xf32>
      %cst_53 = arith.constant 0.000000e+00 : f32
      %115 = vector.broadcast %cst_53 : f32 to vector<1x1xf32>
      %116 = arith.select %111, %114, %115 : vector<1x1xi1>, vector<1x1xf32>
      %cst_54 = arith.constant 1.000000e+00 : f32
      %117 = vector.broadcast %cst_54 : f32 to vector<8x8xf32>
      %118 = arith.divf %37, %117 : vector<8x8xf32>
      %cst_55 = arith.constant dense<0xFF800000> : vector<8xf32>
      %119 = vector.multi_reduction <maximumf>, %118, %cst_55 [1] : vector<8x8xf32> to vector<8xf32>
      %120 = vector.shape_cast %119 : vector<8xf32> to vector<8x1xf32>
      %121 = vector.broadcast %120 : vector<8x1xf32> to vector<8x8xf32>
      %122 = arith.subf %118, %121 : vector<8x8xf32>
      %123 = math.exp %122 : vector<8x8xf32>
      %cst_56 = arith.constant dense<0.000000e+00> : vector<8xf32>
      %124 = vector.multi_reduction <add>, %123, %cst_56 [1] : vector<8x8xf32> to vector<8xf32>
      %125 = vector.shape_cast %124 : vector<8xf32> to vector<8x1xf32>
      %126 = math.log %125 : vector<8x1xf32>
      %127 = vector.broadcast %126 : vector<8x1xf32> to vector<8x8xf32>
      %128 = arith.subf %122, %127 : vector<8x8xf32>
      %c0_57 = arith.constant 0 : index
      %c0_58 = arith.constant 0 : index
      %129 = vector.load %arg11[%c0_57, %c0_58] : memref<8x128xf32, #tpu.memory_space<vmem>>, vector<8x128xf32>
      %c0_59 = arith.constant 0 : index
      %c0_60 = arith.constant 0 : index
      %c0_61 = arith.constant 0 : index
      %130 = vector.load %arg7[%c0_59, %c0_60, %c0_61] : memref<1x1x128xf32, #tpu.memory_space<vmem>>, vector<1x1x128xf32>
      %131 = vector.shape_cast %130 : vector<1x1x128xf32> to vector<1x128xf32>
      %132 = vector.broadcast %131 : vector<1x128xf32> to vector<8x128xf32>
      %133 = arith.addf %129, %132 : vector<8x128xf32>
      %cst_62 = arith.constant 0.000000e+00 : f32
      %134 = vector.broadcast %cst_62 : f32 to vector<8x128xf32>
      %135 = arith.maximumf %133, %134 : vector<8x128xf32>
      %136 = arith.truncf %135 : vector<8x128xf32> to vector<8x128xbf16>
      %c0_63 = arith.constant 0 : index
      %c0_64 = arith.constant 0 : index
      %c0_65 = arith.constant 0 : index
      %137 = vector.load %arg8[%c0_63, %c0_64, %c0_65] : memref<1x128x128xbf16, #tpu.memory_space<vmem>>, vector<1x128x128xbf16>
      %138 = vector.shape_cast %137 : vector<1x128x128xbf16> to vector<128x128xbf16>
      %cst_66 = arith.constant dense<0.000000e+00> : vector<8x128xf32>
      %139 = tpu.matmul %136, %138, %cst_66 {dimension_numbers = #tpu.dot_dimension_numbers<[1], [0], [0], [1], [0, 0, 1, 1], [], []>} : vector<8x128xbf16>, vector<128x128xbf16>, vector<8x128xf32> -> vector<8x128xf32>
      %c0_67 = arith.constant 0 : index
      %c0_68 = arith.constant 0 : index
      %c0_69 = arith.constant 0 : index
      %140 = vector.load %arg9[%c0_67, %c0_68, %c0_69] : memref<1x1x128xf32, #tpu.memory_space<vmem>>, vector<1x1x128xf32>
      %141 = vector.shape_cast %140 : vector<1x1x128xf32> to vector<1x128xf32>
      %142 = vector.broadcast %141 : vector<1x128xf32> to vector<8x128xf32>
      %143 = arith.addf %139, %142 : vector<8x128xf32>
      %144 = arith.mulf %143, %143 : vector<8x128xf32>
      %cst_70 = arith.constant dense<0.000000e+00> : vector<8xf32>
      %145 = vector.multi_reduction <add>, %144, %cst_70 [1] : vector<8x128xf32> to vector<8xf32>
      %146 = vector.shape_cast %145 : vector<8xf32> to vector<8x1xf32>
      %cst_71 = arith.constant 1.000000e-24 : f32
      %147 = vector.broadcast %cst_71 : f32 to vector<8x1xf32>
      %148 = arith.maximumf %146, %147 : vector<8x1xf32>
      %149 = math.rsqrt %148 : vector<8x1xf32>
      %150 = vector.broadcast %149 : vector<8x1xf32> to vector<8x128xf32>
      %151 = arith.mulf %143, %150 : vector<8x128xf32>
      %cst_72 = arith.constant dense<0.000000e+00> : vector<8x8xf32>
      %152 = tpu.matmul %151, %151, %cst_72 {dimension_numbers = #tpu.dot_dimension_numbers<[1], [1], [0], [0], [0, 0, 1, 0], [], []>} : vector<8x128xf32>, vector<8x128xf32>, vector<8x8xf32> -> vector<8x8xf32>
      %cst_73 = arith.constant 1.000000e+30 : f32
      %153 = vector.broadcast %cst_73 : f32 to vector<8x8xf32>
      %154 = arith.select %26, %152, %153 : vector<8x8xi1>, vector<8x8xf32>
      %cst_74 = arith.constant dense<0x7F800000> : vector<8xf32>
      %155 = vector.multi_reduction <minimumf>, %154, %cst_74 [1] : vector<8x8xf32> to vector<8xf32>
      %156 = vector.shape_cast %155 : vector<8xf32> to vector<8x1xf32>
      %cst_75 = arith.constant 0.000000e+00 : f32
      %cst_76 = arith.constant 1.000000e+30 : f32
      %157 = arith.subf %cst_75, %cst_76 : f32
      %158 = vector.broadcast %157 : f32 to vector<8x8xf32>
      %159 = arith.select %27, %152, %158 : vector<8x8xi1>, vector<8x8xf32>
      %cst_77 = arith.constant dense<0xFF800000> : vector<8xf32>
      %160 = vector.multi_reduction <maximumf>, %159, %cst_77 [1] : vector<8x8xf32> to vector<8xf32>
      %161 = vector.shape_cast %160 : vector<8xf32> to vector<8x1xf32>
      %cst_78 = arith.constant 1.000000e-01 : f32
      %162 = vector.broadcast %cst_78 : f32 to vector<8x8xf32>
      %163 = arith.addf %152, %162 : vector<8x8xf32>
      %164 = vector.broadcast %156 : vector<8x1xf32> to vector<8x8xf32>
      %165 = arith.cmpf ogt, %163, %164 : vector<8x8xf32>
      %166 = arith.andi %27, %165 : vector<8x8xi1>
      %cst_79 = arith.constant 1.000000e-01 : f32
      %167 = vector.broadcast %cst_79 : f32 to vector<8x8xf32>
      %168 = arith.subf %152, %167 : vector<8x8xf32>
      %169 = vector.broadcast %161 : vector<8x1xf32> to vector<8x8xf32>
      %170 = arith.cmpf olt, %168, %169 : vector<8x8xf32>
      %171 = arith.andi %26, %170 : vector<8x8xi1>
      %cst_80 = arith.constant 5.000000e-01 : f32
      %172 = vector.broadcast %cst_80 : f32 to vector<8x8xf32>
      %173 = arith.subf %152, %172 : vector<8x8xf32>
      %cst_81 = arith.constant -2.000000e+00 : f32
      %174 = vector.broadcast %cst_81 : f32 to vector<8x8xf32>
      %175 = arith.mulf %174, %173 : vector<8x8xf32>
      %176 = math.exp %175 : vector<8x8xf32>
      %cst_82 = arith.constant 0.000000e+00 : f32
      %177 = vector.broadcast %cst_82 : f32 to vector<8x8xf32>
      %178 = arith.select %171, %176, %177 : vector<8x8xi1>, vector<8x8xf32>
      %cst_83 = arith.constant 5.000000e-01 : f32
      %179 = vector.broadcast %cst_83 : f32 to vector<8x8xf32>
      %180 = arith.subf %152, %179 : vector<8x8xf32>
      %cst_84 = arith.constant 4.000000e+01 : f32
      %181 = vector.broadcast %cst_84 : f32 to vector<8x8xf32>
      %182 = arith.mulf %181, %180 : vector<8x8xf32>
      %183 = math.exp %182 : vector<8x8xf32>
      %cst_85 = arith.constant 0.000000e+00 : f32
      %184 = vector.broadcast %cst_85 : f32 to vector<8x8xf32>
      %185 = arith.select %166, %183, %184 : vector<8x8xi1>, vector<8x8xf32>
      %cst_86 = arith.constant dense<0.000000e+00> : vector<8xf32>
      %186 = vector.multi_reduction <add>, %178, %cst_86 [1] : vector<8x8xf32> to vector<8xf32>
      %187 = vector.shape_cast %186 : vector<8xf32> to vector<8x1xf32>
      %cst_87 = arith.constant 1.000000e+00 : f32
      %188 = vector.broadcast %cst_87 : f32 to vector<8x1xf32>
      %189 = arith.addf %188, %187 : vector<8x1xf32>
      %190 = math.log %189 : vector<8x1xf32>
      %cst_88 = arith.constant 2.000000e+00 : f32
      %191 = vector.broadcast %cst_88 : f32 to vector<8x1xf32>
      %192 = arith.divf %190, %191 : vector<8x1xf32>
      %cst_89 = arith.constant dense<0.000000e+00> : vector<8xf32>
      %193 = vector.multi_reduction <add>, %185, %cst_89 [1] : vector<8x8xf32> to vector<8xf32>
      %194 = vector.shape_cast %193 : vector<8xf32> to vector<8x1xf32>
      %cst_90 = arith.constant 1.000000e+00 : f32
      %195 = vector.broadcast %cst_90 : f32 to vector<8x1xf32>
      %196 = arith.addf %195, %194 : vector<8x1xf32>
      %197 = math.log %196 : vector<8x1xf32>
      %cst_91 = arith.constant 4.000000e+01 : f32
      %198 = vector.broadcast %cst_91 : f32 to vector<8x1xf32>
      %199 = arith.divf %197, %198 : vector<8x1xf32>
      %200 = arith.extui %171 : vector<8x8xi1> to vector<8x8xi32>
      %201 = arith.sitofp %200 : vector<8x8xi32> to vector<8x8xf32>
      %cst_92 = arith.constant dense<0.000000e+00> : vector<8xf32>
      %202 = vector.multi_reduction <add>, %201, %cst_92 [1] : vector<8x8xf32> to vector<8xf32>
      %203 = vector.shape_cast %202 : vector<8xf32> to vector<8x1xf32>
      %cst_93 = arith.constant 0.000000e+00 : f32
      %204 = vector.broadcast %cst_93 : f32 to vector<8x1xf32>
      %205 = arith.cmpf ogt, %203, %204 : vector<8x1xf32>
      %206 = arith.extui %166 : vector<8x8xi1> to vector<8x8xi32>
      %207 = arith.sitofp %206 : vector<8x8xi32> to vector<8x8xf32>
      %cst_94 = arith.constant dense<0.000000e+00> : vector<8xf32>
      %208 = vector.multi_reduction <add>, %207, %cst_94 [1] : vector<8x8xf32> to vector<8xf32>
      %209 = vector.shape_cast %208 : vector<8xf32> to vector<8x1xf32>
      %cst_95 = arith.constant 0.000000e+00 : f32
      %210 = vector.broadcast %cst_95 : f32 to vector<8x1xf32>
      %211 = arith.cmpf ogt, %209, %210 : vector<8x1xf32>
      %212 = arith.andi %205, %211 : vector<8x1xi1>
      %213 = arith.extui %212 : vector<8x1xi1> to vector<8x1xi32>
      %214 = arith.sitofp %213 : vector<8x1xi32> to vector<8x1xf32>
      %215 = arith.addf %192, %199 : vector<8x1xf32>
      %216 = arith.mulf %214, %215 : vector<8x1xf32>
      %cst_96 = arith.constant dense<0.000000e+00> : vector<8xf32>
      %217 = vector.multi_reduction <add>, %216, %cst_96 [1] : vector<8x1xf32> to vector<8xf32>
      %218 = vector.shape_cast %217 : vector<8xf32> to vector<8x1xf32>
      %cst_97 = arith.constant dense<0.000000e+00> : vector<1xf32>
      %219 = vector.multi_reduction <add>, %218, %cst_97 [0] : vector<8x1xf32> to vector<1xf32>
      %220 = vector.shape_cast %219 : vector<1xf32> to vector<1x1xf32>
      %cst_98 = arith.constant dense<0.000000e+00> : vector<8xf32>
      %221 = vector.multi_reduction <add>, %214, %cst_98 [1] : vector<8x1xf32> to vector<8xf32>
      %222 = vector.shape_cast %221 : vector<8xf32> to vector<8x1xf32>
      %cst_99 = arith.constant dense<0.000000e+00> : vector<1xf32>
      %223 = vector.multi_reduction <add>, %222, %cst_99 [0] : vector<8x1xf32> to vector<1xf32>
      %224 = vector.shape_cast %223 : vector<1xf32> to vector<1x1xf32>
      %cst_100 = arith.constant 0.000000e+00 : f32
      %225 = vector.broadcast %cst_100 : f32 to vector<1x1xf32>
      %226 = arith.cmpf ogt, %224, %225 : vector<1x1xf32>
      %cst_101 = arith.constant 1.000000e+00 : f32
      %227 = vector.broadcast %cst_101 : f32 to vector<1x1xf32>
      %228 = arith.maximumf %224, %227 : vector<1x1xf32>
      %229 = arith.divf %220, %228 : vector<1x1xf32>
      %cst_102 = arith.constant 0.000000e+00 : f32
      %230 = vector.broadcast %cst_102 : f32 to vector<1x1xf32>
      %231 = arith.select %226, %229, %230 : vector<1x1xi1>, vector<1x1xf32>
      %cst_103 = arith.constant 1.000000e+00 : f32
      %232 = vector.broadcast %cst_103 : f32 to vector<8x8xf32>
      %233 = arith.divf %152, %232 : vector<8x8xf32>
      %cst_104 = arith.constant dense<0xFF800000> : vector<8xf32>
      %234 = vector.multi_reduction <maximumf>, %233, %cst_104 [1] : vector<8x8xf32> to vector<8xf32>
      %235 = vector.shape_cast %234 : vector<8xf32> to vector<8x1xf32>
      %236 = vector.broadcast %235 : vector<8x1xf32> to vector<8x8xf32>
      %237 = arith.subf %233, %236 : vector<8x8xf32>
      %238 = math.exp %237 : vector<8x8xf32>
      %cst_105 = arith.constant dense<0.000000e+00> : vector<8xf32>
      %239 = vector.multi_reduction <add>, %238, %cst_105 [1] : vector<8x8xf32> to vector<8xf32>
      %240 = vector.shape_cast %239 : vector<8xf32> to vector<8x1xf32>
      %241 = math.log %240 : vector<8x1xf32>
      %242 = vector.broadcast %241 : vector<8x1xf32> to vector<8x8xf32>
      %243 = arith.subf %237, %242 : vector<8x8xf32>
      %244 = math.exp %243 : vector<8x8xf32>
      %245 = arith.subf %243, %128 : vector<8x8xf32>
      %246 = arith.mulf %244, %245 : vector<8x8xf32>
      %cst_106 = arith.constant dense<0.000000e+00> : vector<8xf32>
      %247 = vector.multi_reduction <add>, %246, %cst_106 [1] : vector<8x8xf32> to vector<8xf32>
      %248 = vector.shape_cast %247 : vector<8xf32> to vector<8x1xf32>
      %cst_107 = arith.constant dense<0.000000e+00> : vector<1xf32>
      %249 = vector.multi_reduction <add>, %248, %cst_107 [0] : vector<8x1xf32> to vector<1xf32>
      %250 = vector.shape_cast %249 : vector<1xf32> to vector<1x1xf32>
      %cst_108 = arith.constant 1.000000e+00 : f32
      %251 = vector.broadcast %cst_108 : f32 to vector<1x1xf32>
      %252 = arith.mulf %250, %251 : vector<1x1xf32>
      %cst_109 = arith.constant 8.000000e+00 : f32
      %253 = vector.broadcast %cst_109 : f32 to vector<1x1xf32>
      %254 = arith.divf %252, %253 : vector<1x1xf32>
      %255 = tpu.iota {dimensions = array<i32: 1>} : vector<8x128xi32>
      %c0_i32_110 = arith.constant 0 : i32
      %256 = vector.broadcast %c0_i32_110 : i32 to vector<8x128xi32>
      %257 = arith.cmpi eq, %255, %256 : vector<8x128xi32>
      %cst_111 = arith.constant 0.000000e+00 : f32
      %258 = vector.shape_cast %231 : vector<1x1xf32> to vector<1x1xf32>
      %259 = vector.broadcast %258 : vector<1x1xf32> to vector<8x128xf32>
      %260 = vector.broadcast %cst_111 : f32 to vector<8x128xf32>
      %261 = arith.select %257, %259, %260 : vector<8x128xi1>, vector<8x128xf32>
      %c1_i32 = arith.constant 1 : i32
      %262 = vector.broadcast %c1_i32 : i32 to vector<8x128xi32>
      %263 = arith.cmpi eq, %255, %262 : vector<8x128xi32>
      %cst_112 = arith.constant 0.000000e+00 : f32
      %264 = vector.shape_cast %254 : vector<1x1xf32> to vector<1x1xf32>
      %265 = vector.broadcast %264 : vector<1x1xf32> to vector<8x128xf32>
      %266 = vector.broadcast %cst_112 : f32 to vector<8x128xf32>
      %267 = arith.select %263, %265, %266 : vector<8x128xi1>, vector<8x128xf32>
      %268 = arith.addf %261, %267 : vector<8x128xf32>
      %c2_i32 = arith.constant 2 : i32
      %269 = vector.broadcast %c2_i32 : i32 to vector<8x128xi32>
      %270 = arith.cmpi eq, %255, %269 : vector<8x128xi32>
      %cst_113 = arith.constant 0.000000e+00 : f32
      %271 = vector.shape_cast %116 : vector<1x1xf32> to vector<1x1xf32>
      %272 = vector.broadcast %271 : vector<1x1xf32> to vector<8x128xf32>
      %273 = vector.broadcast %cst_113 : f32 to vector<8x128xf32>
      %274 = arith.select %270, %272, %273 : vector<8x128xi1>, vector<8x128xf32>
      %275 = arith.addf %268, %274 : vector<8x128xf32>
      %c0_114 = arith.constant 0 : index
      %c0_115 = arith.constant 0 : index
      %c0_116 = arith.constant 0 : index
      %276 = vector.load %arg10[%c0_114, %c0_115, %c0_116] : memref<1x8x128xf32, #tpu.memory_space<vmem>>, vector<1x8x128xf32>
      %277 = vector.shape_cast %276 : vector<1x8x128xf32> to vector<8x128xf32>
      %278 = vector.shape_cast %275 : vector<8x128xf32> to vector<1x8x128xf32>
      tpu.vector_store %arg10[%c0_114, %c0_115, %c0_116], %278 {strides = array<i32>} : memref<1x8x128xf32, #tpu.memory_space<vmem>>, vector<1x8x128xf32>,
      %c0_i32_117 = arith.constant 0 : i32
      %279 = arith.cmpi eq, %arg0, %c0_i32_117 : i32
      %280 = arith.extui %279 : i1 to i32
      %c0_i32_118 = arith.constant 0 : i32
      %281 = arith.cmpi ne, %280, %c0_i32_118 : i32
      scf.if %281 {
        %c0_119 = arith.constant 0 : index
        %c0_120 = arith.constant 0 : index
        %282 = vector.load %arg12[%c0_119, %c0_120] : memref<8x8xf32, #tpu.memory_space<vmem>>, vector<8x8xf32>
        %cst_121 = arith.constant 0.000000e+00 : f32
        %283 = vector.broadcast %cst_121 : f32 to vector<8x8xf32>
        %284 = arith.select %19, %282, %283 : vector<8x8xi1>, vector<8x8xf32>
        %cst_122 = arith.constant dense<0.000000e+00> : vector<8xf32>
        %285 = vector.multi_reduction <add>, %284, %cst_122 [1] : vector<8x8xf32> to vector<8xf32>
        %286 = vector.shape_cast %285 : vector<8xf32> to vector<8x1xf32>
        %cst_123 = arith.constant dense<0.000000e+00> : vector<8xf32>
        %287 = vector.multi_reduction <add>, %284, %cst_123 [0] : vector<8x8xf32> to vector<8xf32>
        %288 = vector.shape_cast %287 : vector<8xf32> to vector<1x8xf32>
        %cst_124 = arith.constant 1.000000e-24 : f32
        %289 = vector.broadcast %cst_124 : f32 to vector<8x1xf32>
        %290 = arith.maximumf %286, %289 : vector<8x1xf32>
        %291 = math.rsqrt %290 : vector<8x1xf32>
        %cst_125 = arith.constant 1.000000e-24 : f32
        %292 = vector.broadcast %cst_125 : f32 to vector<1x8xf32>
        %293 = arith.maximumf %288, %292 : vector<1x8xf32>
        %294 = math.rsqrt %293 : vector<1x8xf32>
        %295 = vector.broadcast %291 : vector<8x1xf32> to vector<8x8xf32>
        %296 = arith.mulf %282, %295 : vector<8x8xf32>
        %297 = vector.broadcast %294 : vector<1x8xf32> to vector<8x8xf32>
        %298 = arith.mulf %296, %297 : vector<8x8xf32>
        %cst_126 = arith.constant 1.000000e+00 : f32
        %299 = vector.broadcast %cst_126 : f32 to vector<8x8xf32>
        %300 = arith.divf %298, %299 : vector<8x8xf32>
        %cst_127 = arith.constant dense<0xFF800000> : vector<8xf32>
        %301 = vector.multi_reduction <maximumf>, %300, %cst_127 [1] : vector<8x8xf32> to vector<8xf32>
        %302 = vector.shape_cast %301 : vector<8xf32> to vector<8x1xf32>
        %303 = vector.broadcast %302 : vector<8x1xf32> to vector<8x8xf32>
        %304 = arith.subf %300, %303 : vector<8x8xf32>
        %305 = math.exp %304 : vector<8x8xf32>
        %cst_128 = arith.constant dense<0.000000e+00> : vector<8xf32>
        %306 = vector.multi_reduction <add>, %305, %cst_128 [1] : vector<8x8xf32> to vector<8xf32>
        %307 = vector.shape_cast %306 : vector<8xf32> to vector<8x1xf32>
        %308 = math.log %307 : vector<8x1xf32>
        %309 = vector.broadcast %308 : vector<8x1xf32> to vector<8x8xf32>
        %310 = arith.subf %304, %309 : vector<8x8xf32>
        %311 = math.exp %310 : vector<8x8xf32>
        %312 = arith.subf %310, %128 : vector<8x8xf32>
        %313 = arith.mulf %311, %312 : vector<8x8xf32>
        %cst_129 = arith.constant dense<0.000000e+00> : vector<8xf32>
        %314 = vector.multi_reduction <add>, %313, %cst_129 [1] : vector<8x8xf32> to vector<8xf32>
        %315 = vector.shape_cast %314 : vector<8xf32> to vector<8x1xf32>
        %cst_130 = arith.constant dense<0.000000e+00> : vector<1xf32>
        %316 = vector.multi_reduction <add>, %315, %cst_130 [0] : vector<8x1xf32> to vector<1xf32>
        %317 = vector.shape_cast %316 : vector<1xf32> to vector<1x1xf32>
        %cst_131 = arith.constant 1.000000e+00 : f32
        %318 = vector.broadcast %cst_131 : f32 to vector<1x1xf32>
        %319 = arith.mulf %317, %318 : vector<1x1xf32>
        %cst_132 = arith.constant 8.000000e+00 : f32
        %320 = vector.broadcast %cst_132 : f32 to vector<1x1xf32>
        %321 = arith.divf %319, %320 : vector<1x1xf32>
        %c3_i32 = arith.constant 3 : i32
        %322 = vector.broadcast %c3_i32 : i32 to vector<8x128xi32>
        %323 = arith.cmpi eq, %255, %322 : vector<8x128xi32>
        %cst_133 = arith.constant 0.000000e+00 : f32
        %324 = vector.shape_cast %321 : vector<1x1xf32> to vector<1x1xf32>
        %325 = vector.broadcast %324 : vector<1x1xf32> to vector<8x128xf32>
        %326 = vector.broadcast %cst_133 : f32 to vector<8x128xf32>
        %327 = arith.select %323, %325, %326 : vector<8x128xi1>, vector<8x128xf32>
        %328 = arith.addf %275, %327 : vector<8x128xf32>
        %c0_134 = arith.constant 0 : index
        %c0_135 = arith.constant 0 : index
        %c0_136 = arith.constant 0 : index
        %329 = vector.load %arg10[%c0_134, %c0_135, %c0_136] : memref<1x8x128xf32, #tpu.memory_space<vmem>>, vector<1x8x128xf32>
        %330 = vector.shape_cast %329 : vector<1x8x128xf32> to vector<8x128xf32>
        %331 = vector.shape_cast %328 : vector<8x128xf32> to vector<1x8x128xf32>
        tpu.vector_store %arg10[%c0_134, %c0_135, %c0_136], %331 {strides = array<i32>} : memref<1x8x128xf32, #tpu.memory_space<vmem>>, vector<1x8x128xf32>,
      } else {
      }
    } else {
    }
    return
  }
  func.func @transform_0(%arg0: i32, %arg1: i32) -> (i32, i32) {
    %c0_i32 = arith.constant 0 : i32
    %c0_i32_0 = arith.constant 0 : i32
    %c0_i32_1 = arith.constant 0 : i32
    return %c0_i32, %c0_i32_0 : i32, i32
  }
  func.func @transform_1(%arg0: i32, %arg1: i32) -> (i32, i32) {
    %c0_i32 = arith.constant 0 : i32
    %c0_i32_0 = arith.constant 0 : i32
    %c0_i32_1 = arith.constant 0 : i32
    return %c0_i32, %c0_i32_0 : i32, i32
  }
  func.func @transform_2(%arg0: i32, %arg1: i32) -> (i32, i32) {
    %c0_i32 = arith.constant 0 : i32
    %c0_i32_0 = arith.constant 0 : i32
    %c0_i32_1 = arith.constant 0 : i32
    return %c0_i32, %c0_i32_0 : i32, i32
  }
  func.func @transform_3(%arg0: i32, %arg1: i32) -> (i32, i32) {
    %c0_i32 = arith.constant 0 : i32
    %c0_i32_0 = arith.constant 0 : i32
    return %c0_i32, %arg1 : i32, i32
  }
  func.func @transform_4(%arg0: i32, %arg1: i32) -> (i32, i32, i32) {
    %c0_i32 = arith.constant 0 : i32
    %c0_i32_0 = arith.constant 0 : i32
    return %arg0, %arg1, %c0_i32 : i32, i32, i32
  }
  func.func @transform_5(%arg0: i32, %arg1: i32) -> (i32, i32, i32) {
    %c0_i32 = arith.constant 0 : i32
    %c0_i32_0 = arith.constant 0 : i32
    %c0_i32_1 = arith.constant 0 : i32
    return %arg0, %c0_i32, %c0_i32_0 : i32, i32, i32
  }
  func.func @transform_6(%arg0: i32, %arg1: i32) -> (i32, i32, i32) {
    %c0_i32 = arith.constant 0 : i32
    %c0_i32_0 = arith.constant 0 : i32
    %c0_i32_1 = arith.constant 0 : i32
    return %arg0, %c0_i32, %c0_i32_0 : i32, i32, i32
  }
  func.func @transform_7(%arg0: i32, %arg1: i32) -> (i32, i32, i32) {
    %c0_i32 = arith.constant 0 : i32
    %c0_i32_0 = arith.constant 0 : i32
    %c0_i32_1 = arith.constant 0 : i32
    return %arg0, %c0_i32, %c0_i32_0 : i32, i32, i32
  }
  func.func @transform_8(%arg0: i32, %arg1: i32) -> (i32, i32, i32) {
    %c0_i32 = arith.constant 0 : i32
    %c0_i32_0 = arith.constant 0 : i32
    %c0_i32_1 = arith.constant 0 : i32
    return %arg0, %c0_i32, %c0_i32_0 : i32, i32, i32
  }
}

</mosaic_0001>

<llo_original>
// kernel: tpu_custom_call.1
$region0: #{tpu_custom_call.1}
  #allocation0 [shape = 'u32[]', space=smem, size = 0x4, offset = 0x4, fixed_abs, tag = 'smem constant byte address 0x4 - core index']
  #allocation1 [shape = 'u32[72,128]{1,0:T(1,128)}', space=vmem, size = 0x9000, scoped, tag = 'internal scratch']
  #allocation2 [shape = 'f32[8,128]{1,0:T(8,128)}', space=vmem, size = 0x1000, scoped, tag = 'scratch operand']
  #allocation3 [shape = 'f32[8,8]{1,0:T(8,128)}', space=vmem, size = 0x1000, scoped, tag = 'scratch operand']
  %s0 = inlined_call_operand.vmem [shape: s32[8,1], index: 0, kind: input, shape index: {}]
  %s1 = inlined_call_operand.hbm [shape: s32[1,8], index: 1, kind: input, shape index: {}]
  %s2 = inlined_call_operand.vmem [shape: f32[8,32], index: 2, kind: input, shape index: {}]
  %s3 = inlined_call_operand.hbm [shape: f32[8,64], index: 3, kind: input, shape index: {}]
  %s4 = inlined_call_operand.hbm [shape: bf16[2,64,128], index: 4, kind: input, shape index: {}]
  %s5 = inlined_call_operand.vmem [shape: f32[2,1,128], index: 5, kind: input, shape index: {}]
  %s6 = inlined_call_operand.hbm [shape: bf16[2,128,128], index: 6, kind: input, shape index: {}]
  %s7 = inlined_call_operand.vmem [shape: f32[2,1,128], index: 7, kind: input, shape index: {}]
  %s8 = inlined_call_operand.hbm [shape: f32[2,8,128], index: 8, kind: output, shape index: {}]
  %s9 = sld [smem:[#allocation0]]
  $region101: #{tpu_custom_call.1} parent=0
    _
  %s11 = ssub.s32 1, %s9
  %s12 = scalar_select 0, %s11, %s9
  $region1: #{tpu_custom_call.1} parent=0
    #allocation4 [shape = 'u8[512]{0}', space=vmem, size = 0x400, scoped, tag = 'input window, operand 1, single buffered']
    #allocation5 [shape = 's32[2]{0}', space=sflag, size = 0x8, scoped, tag = 'scoped memory for tpu_custom_call.1']
    #allocation6 [shape = 's32[2]{0}', space=sflag, size = 0x8, scoped, tag = 'scoped memory for tpu_custom_call.1']
    #allocation7 [shape = 'u8[4096]{0}', space=vmem, size = 0x1000, scoped, tag = 'input window, operand 3, single buffered']
    #allocation8 [shape = 's32[1]{0}', space=sflag, size = 0x4, scoped, tag = 'scoped memory for tpu_custom_call.1']
    #allocation9 [shape = 'u8[32768]{0}', space=vmem, size = 0x8000, scoped, tag = 'input window, operand 4']
    #allocation10 [shape = 'u8[65536]{0}', space=vmem, size = 0x10000, scoped, tag = 'input window, operand 6']
    #allocation11 [shape = 'u8[8192]{0}', space=vmem, size = 0x2000, scoped, tag = 'output window, operand 0']
    %13 = vsyncpa [#allocation5], 0
    %14 = vsyncpa [#allocation8], 0
    %15 = vsyncpa [#allocation6], 0
    %s16 = scalar_lea.sflag [#allocation6], 1
    %17 = vsyncpa %s16, 0
    loop: start=0, step=1, limit=4
    $region2: #{tpu_custom_call.1} parent=1 // loop_pre_header
      _
    $region3: #{tpu_custom_call.1} parent=1 // loop_header
      %s19 = sphi 0, %s23
      %p20 = scmp.ge.s32.totalorder %s19, 4
      %s26 = sphi 0, %s38
      %s27 = sphi 0, %s34
      %s28 = sphi 0, %s26
      %s29 = sphi 0, %s27
      %s30 = sphi 0, %s28
      %s31 = sphi 0, %s29
      %s39 = sphi 0, %s39
      %s41 = sphi 0, %s39
      %s42 = sphi 0, %s41
      %s56 = sphi 0, %s42
      %s60 = sphi 0, %s60
      %s62 = sphi 0, %s60
      %s63 = sphi 0, %s62
      %s77 = sphi 0, %s63
      %s81 = sphi 0, %s81
      %s83 = sphi 0, %s81
      %s84 = sphi 0, %s83
      %s98 = sphi 0, %s84
      %s104 = sphi 0, %s106
      %s107 = sphi 0, %s104
      %s108 = sphi 0, %s107
      %s124 = sphi 0, %s108
      %s132 = sphi 0, %s134
      %s135 = sphi 0, %s132
      %s136 = sphi 0, %s135
      %s152 = sphi 0, %s136
      %s158 = sphi 0, %s160
      %s161 = sphi 0, %s158
      %s162 = sphi 0, %s161
      %s178 = sphi 0, %s162
      %s184 = sphi 0, %s186
      %s187 = sphi 0, %s184
      %s188 = sphi 0, %s187
      %s204 = sphi 0, %s188
      %s210 = sphi 0, %s212
      %s213 = sphi 0, %s210
      %s214 = sphi 0, %s213
      %s230 = sphi 0, %s214
      %s236 = sphi 0, %s238
      %s239 = sphi 0, %s236
      %s240 = sphi 0, %s239
      %s256 = sphi 0, %s240
    $region4: #{tpu_custom_call.1} parent=1 // loop_header_branch
      %22 = sbr.rel (%p20) target = $region8
    $region5: #{tpu_custom_call.1} parent=1 // loop_body
      %s24 = ssub.s32 %s19, 1
      %s25 = ssub.s32 %s19, 2
      %s32 = sadd.s32 1, %s27
      %p33 = scmp.ge.s32.totalorder %s32, 1
      %s34 = scalar_select %p33, 0, %s32
      %s35 = sadd.s32 1, %s26
      %s36 = scalar_select %p33, %s35, %s26
      %p37 = scmp.ge.s32.totalorder %s36, 2
      %s38 = scalar_select %p37, 0, %s36
      %s40 = sadd.s32 %s39, 1
      %p43 = scmp.eq.s32.totalorder %s19, 1
      %p44 = scmp.ne.s32.totalorder %s39, %s41
      %p45 = scmp.eq.s32.totalorder %s19, 0
      %p46 = por %p44, %p45
      %p47 = scmp.ne.s32.totalorder %s39, %s41
      %p48 = scmp.eq.s32.totalorder %s24, 1
      %p49 = por %p47, %p48
      %p50 = scmp.ne.s32.totalorder %s41, %s42
      %p51 = scmp.eq.s32.totalorder %s24, 0
      %p52 = por %p50, %p51
      %p53 = scmp.ne.s32.totalorder %s41, %s42
      %p54 = scmp.eq.s32.totalorder %s25, 1
      %p55 = por %p53, %p54
      %p57 = scmp.ne.s32.totalorder %s42, %s56
      %p58 = scmp.eq.s32.totalorder %s25, 0
      %p59 = por %p57, %p58
      %s61 = sadd.s32 %s60, 1
      %p64 = scmp.eq.s32.totalorder %s19, 1
      %p65 = scmp.ne.s32.totalorder %s60, %s62
      %p66 = scmp.eq.s32.totalorder %s19, 0
      %p67 = por %p65, %p66
      %p68 = scmp.ne.s32.totalorder %s60, %s62
      %p69 = scmp.eq.s32.totalorder %s24, 1
      %p70 = por %p68, %p69
      %p71 = scmp.ne.s32.totalorder %s62, %s63
      %p72 = scmp.eq.s32.totalorder %s24, 0
      %p73 = por %p71, %p72
      %p74 = scmp.ne.s32.totalorder %s62, %s63
      %p75 = scmp.eq.s32.totalorder %s25, 1
      %p76 = por %p74, %p75
      %p78 = scmp.ne.s32.totalorder %s63, %s77
      %p79 = scmp.eq.s32.totalorder %s25, 0
      %p80 = por %p78, %p79
      %s82 = sadd.s32 %s81, 1
      %p85 = scmp.eq.s32.totalorder %s19, 1
      %p86 = scmp.ne.s32.totalorder %s81, %s83
      %p87 = scmp.eq.s32.totalorder %s19, 0
      %p88 = por %p86, %p87
      %p89 = scmp.ne.s32.totalorder %s81, %s83
      %p90 = scmp.eq.s32.totalorder %s24, 1
      %p91 = por %p89, %p90
      %p92 = scmp.ne.s32.totalorder %s83, %s84
      %p93 = scmp.eq.s32.totalorder %s24, 0
      %p94 = por %p92, %p93
      %p95 = scmp.ne.s32.totalorder %s83, %s84
      %p96 = scmp.eq.s32.totalorder %s25, 1
      %p97 = por %p95, %p96
      %p99 = scmp.ne.s32.totalorder %s84, %s98
      %p100 = scmp.eq.s32.totalorder %s25, 0
      %p101 = por %p99, %p100
      %s102 = ssub.s32 %s27, %s34
      %p103 = scmp.eq.s32.totalorder %s102, 0
      %s105 = sadd.s32 %s104, 1
      %s106 = scalar_select %p103, %s104, %s105
      %p109 = pneg %p103
      %p110 = scmp.eq.s32.totalorder %s19, 1
      %p111 = por %p109, %p110
      %p112 = scmp.ne.s32.totalorder %s104, %s107
      %p113 = scmp.eq.s32.totalorder %s19, 0
      %p114 = por %p112, %p113
      %p115 = scmp.ne.s32.totalorder %s104, %s107
      %p116 = scmp.eq.s32.totalorder %s24, 1
      %p117 = por %p115, %p116
      %p118 = scmp.ne.s32.totalorder %s107, %s108
      %p119 = scmp.eq.s32.totalorder %s24, 0
      %p120 = por %p118, %p119
      %p121 = scmp.ne.s32.totalorder %s107, %s108
      %p122 = scmp.eq.s32.totalorder %s25, 1
      %p123 = por %p121, %p122
      %p125 = scmp.ne.s32.totalorder %s108, %s124
      %p126 = scmp.eq.s32.totalorder %s25, 0
      %p127 = por %p125, %p126
      %s128 = ssub.s32 %s26, %s38
      %s129 = ssub.s32 %s27, %s34
      %s130 = sor.u32 %s128, %s129
      %p131 = scmp.eq.s32.totalorder %s130, 0
      %s133 = sadd.s32 %s132, 1
      %s134 = scalar_select %p131, %s132, %s133
      %p137 = pneg %p131
      %p138 = scmp.eq.s32.totalorder %s19, 1
      %p139 = por %p137, %p138
      %p140 = scmp.ne.s32.totalorder %s132, %s135
      %p141 = scmp.eq.s32.totalorder %s19, 0
      %p142 = por %p140, %p141
      %p143 = scmp.ne.s32.totalorder %s132, %s135
      %p144 = scmp.eq.s32.totalorder %s24, 1
      %p145 = por %p143, %p144
      %p146 = scmp.ne.s32.totalorder %s135, %s136
      %p147 = scmp.eq.s32.totalorder %s24, 0
      %p148 = por %p146, %p147
      %p149 = scmp.ne.s32.totalorder %s135, %s136
      %p150 = scmp.eq.s32.totalorder %s25, 1
      %p151 = por %p149, %p150
      %p153 = scmp.ne.s32.totalorder %s136, %s152
      %p154 = scmp.eq.s32.totalorder %s25, 0
      %p155 = por %p153, %p154
      %s156 = ssub.s32 %s26, %s38
      %p157 = scmp.eq.s32.totalorder %s156, 0
      %s159 = sadd.s32 %s158, 1
      %s160 = scalar_select %p157, %s158, %s159
      %p163 = pneg %p157
      %p164 = scmp.eq.s32.totalorder %s19, 1
      %p165 = por %p163, %p164
      %p166 = scmp.ne.s32.totalorder %s158, %s161
      %p167 = scmp.eq.s32.totalorder %s19, 0
      %p168 = por %p166, %p167
      %p169 = scmp.ne.s32.totalorder %s158, %s161
      %p170 = scmp.eq.s32.totalorder %s24, 1
      %p171 = por %p169, %p170
      %p172 = scmp.ne.s32.totalorder %s161, %s162
      %p173 = scmp.eq.s32.totalorder %s24, 0
      %p174 = por %p172, %p173
      %p175 = scmp.ne.s32.totalorder %s161, %s162
      %p176 = scmp.eq.s32.totalorder %s25, 1
      %p177 = por %p175, %p176
      %p179 = scmp.ne.s32.totalorder %s162, %s178
      %p180 = scmp.eq.s32.totalorder %s25, 0
      %p181 = por %p179, %p180
      %s182 = ssub.s32 %s26, %s38
      %p183 = scmp.eq.s32.totalorder %s182, 0
      %s185 = sadd.s32 %s184, 1
      %s186 = scalar_select %p183, %s184, %s185
      %p189 = pneg %p183
      %p190 = scmp.eq.s32.totalorder %s19, 1
      %p191 = por %p189, %p190
      %p192 = scmp.ne.s32.totalorder %s184, %s187
      %p193 = scmp.eq.s32.totalorder %s19, 0
      %p194 = por %p192, %p193
      %p195 = scmp.ne.s32.totalorder %s184, %s187
      %p196 = scmp.eq.s32.totalorder %s24, 1
      %p197 = por %p195, %p196
      %p198 = scmp.ne.s32.totalorder %s187, %s188
      %p199 = scmp.eq.s32.totalorder %s24, 0
      %p200 = por %p198, %p199
      %p201 = scmp.ne.s32.totalorder %s187, %s188
      %p202 = scmp.eq.s32.totalorder %s25, 1
      %p203 = por %p201, %p202
      %p205 = scmp.ne.s32.totalorder %s188, %s204
      %p206 = scmp.eq.s32.totalorder %s25, 0
      %p207 = por %p205, %p206
      %s208 = ssub.s32 %s26, %s38
      %p209 = scmp.eq.s32.totalorder %s208, 0
      %s211 = sadd.s32 %s210, 1
      %s212 = scalar_select %p209, %s210, %s211
      %p215 = pneg %p209
      %p216 = scmp.eq.s32.totalorder %s19, 1
      %p217 = por %p215, %p216
      %p218 = scmp.ne.s32.totalorder %s210, %s213
      %p219 = scmp.eq.s32.totalorder %s19, 0
      %p220 = por %p218, %p219
      %p221 = scmp.ne.s32.totalorder %s210, %s213
      %p222 = scmp.eq.s32.totalorder %s24, 1
      %p223 = por %p221, %p222
      %p224 = scmp.ne.s32.totalorder %s213, %s214
      %p225 = scmp.eq.s32.totalorder %s24, 0
      %p226 = por %p224, %p225
      %p227 = scmp.ne.s32.totalorder %s213, %s214
      %p228 = scmp.eq.s32.totalorder %s25, 1
      %p229 = por %p227, %p228
      %p231 = scmp.ne.s32.totalorder %s214, %s230
      %p232 = scmp.eq.s32.totalorder %s25, 0
      %p233 = por %p231, %p232
      %s234 = ssub.s32 %s26, %s38
      %p235 = scmp.eq.s32.totalorder %s234, 0
      %s237 = sadd.s32 %s236, 1
      %s238 = scalar_select %p235, %s236, %s237
      %p241 = pneg %p235
      %p242 = scmp.eq.s32.totalorder %s19, 1
      %p243 = por %p241, %p242
      %p244 = scmp.ne.s32.totalorder %s236, %s239
      %p245 = scmp.eq.s32.totalorder %s19, 0
      %p246 = por %p244, %p245
      %p247 = scmp.ne.s32.totalorder %s236, %s239
      %p248 = scmp.eq.s32.totalorder %s24, 1
      %p249 = por %p247, %p248
      %p250 = scmp.ne.s32.totalorder %s239, %s240
      %p251 = scmp.eq.s32.totalorder %s24, 0
      %p252 = por %p250, %p251
      %p253 = scmp.ne.s32.totalorder %s239, %s240
      %p254 = scmp.eq.s32.totalorder %s25, 1
      %p255 = por %p253, %p254
      %p257 = scmp.ne.s32.totalorder %s240, %s256
      %p258 = scmp.eq.s32.totalorder %s25, 0
      %p259 = por %p257, %p258
      %p260 = scmp.le.s32.totalorder 1, %s19
      %p261 = scmp.lt.s32.totalorder %s19, 3
      %p262 = pnand %p260, %p261
      %p263 = pneg %p262
      // Predicated region
      $region9: #{tpu_custom_call.1} parent=5 // pred_check
        _
      $region10: #{tpu_custom_call.1} parent=5 // pred_check_branch
        %265 = sbr.rel (%p262) target = $region12
      $region11: #{tpu_custom_call.1} parent=5 // pred_region
        %s266 = ssub.s32 %s19, 1
        // Predicated region
        $region13: #{tpu_custom_call.1} parent=11 // pred_check
          %p267 = pneg %p52
        $region14: #{tpu_custom_call.1} parent=11 // pred_check_branch
          %269 = sbr.rel (%p267) target = $region16
        $region15: #{tpu_custom_call.1} parent=11 // pred_region
          _
        $region16: #{tpu_custom_call.1} parent=11 // pred_fallthru
          _
        // Predicated region
        $region17: #{tpu_custom_call.1} parent=11 // pred_check
          %p270 = pneg %p73
        $region18: #{tpu_custom_call.1} parent=11 // pred_check_branch
          %272 = sbr.rel (%p270) target = $region20
        $region19: #{tpu_custom_call.1} parent=11 // pred_region
          %274 = vsyncadd [#allocation5], 0
          %s276 = sshll.u32 %s1, 4
          %s277 = int_to_ptr.hbm [resolvable:$true] %s276
          %s278 = sshll.u32 [#allocation4], 4
          %s279 = int_to_ptr.vmem [resolvable:$true] %s278
          %281 = dma.hbm_to_vmem [thread:$0]  %s277, 16, %s279, [#allocation5]
        $region20: #{tpu_custom_call.1} parent=11 // pred_fallthru
          _
        // Predicated region
        $region21: #{tpu_custom_call.1} parent=11 // pred_check
          %p282 = pneg %p94
        $region22: #{tpu_custom_call.1} parent=11 // pred_check_branch
          %284 = sbr.rel (%p282) target = $region24
        $region23: #{tpu_custom_call.1} parent=11 // pred_region
          _
        $region24: #{tpu_custom_call.1} parent=11 // pred_fallthru
          _
        // Predicated region
        $region25: #{tpu_custom_call.1} parent=11 // pred_check
          %p285 = pneg %p120
        $region26: #{tpu_custom_call.1} parent=11 // pred_check_branch
          %287 = sbr.rel (%p285) target = $region28
        $region27: #{tpu_custom_call.1} parent=11 // pred_region
          %289 = vsyncadd [#allocation8], 0
          %s290 = smul.addr %s29, 8
          %s291 = scalar_lea.hbm %s3, %s290
          %s293 = sshll.u32 %s291, 4
          %s294 = int_to_ptr.hbm [resolvable:$true] %s293
          %s295 = sshll.u32 [#allocation7], 4
          %s296 = int_to_ptr.vmem [resolvable:$true] %s295
          %298 = dma.hbm_to_vmem [thread:$0]  %s294, 128, %s296, [#allocation8]
        $region28: #{tpu_custom_call.1} parent=11 // pred_fallthru
          _
      $region12: #{tpu_custom_call.1} parent=5 // pred_fallthru
        _
      %p299 = scmp.lt.s32.totalorder %s19, 2
      // Predicated region
      $region29: #{tpu_custom_call.1} parent=5 // pred_check
        %p300 = pneg %p299
      $region30: #{tpu_custom_call.1} parent=5 // pred_check_branch
        %302 = sbr.rel (%p300) target = $region32
      $region31: #{tpu_custom_call.1} parent=5 // pred_region
        // Predicated region
        $region33: #{tpu_custom_call.1} parent=31 // pred_check
          %p303 = pneg %p142
        $region34: #{tpu_custom_call.1} parent=31 // pred_check_branch
          %305 = sbr.rel (%p303) target = $region36
        $region35: #{tpu_custom_call.1} parent=31 // pred_region
          %s306 = sand.u32 %s19, 1
          %s307 = scalar_lea.sflag [#allocation5], %s306
          %s308 = sand.u32 %s132, 1
          %s309 = smul.addr %s308, 32
          %s310 = scalar_lea.vmem [#allocation9], %s309
          %s311 = smul.u32 8, %s27
          %313 = vsyncadd %s307, 0
          %s314 = smul.addr %s26, 8
          %s315 = sadd.s32 %s311, %s314
          %s316 = smul.addr %s315, 4
          %s317 = scalar_lea.hbm %s4, %s316
          %s318 = sshll.u32 %s317, 4
          %s319 = int_to_ptr.hbm [resolvable:$true] %s318
          %s320 = sshll.u32 %s310, 4
          %s321 = int_to_ptr.vmem [resolvable:$true] %s320
          %326 = dma.hbm_to_vmem [thread:$0]  %s319, 512, %s321, %s307, 64, 64, 4
        $region36: #{tpu_custom_call.1} parent=31 // pred_fallthru
          _
        // Predicated region
        $region37: #{tpu_custom_call.1} parent=31 // pred_check
          %p327 = pneg %p168
        $region38: #{tpu_custom_call.1} parent=31 // pred_check_branch
          %329 = sbr.rel (%p327) target = $region40
        $region39: #{tpu_custom_call.1} parent=31 // pred_region
          %p330 = scmp.lt.s32.totalorder %s26, 1
          %s331 = scalar_select %p330, %s26, 1
          %s332 = scalar_lea.vmem %s5, %s331
        $region40: #{tpu_custom_call.1} parent=31 // pred_fallthru
          _
        // Predicated region
        $region41: #{tpu_custom_call.1} parent=31 // pred_check
          %p333 = pneg %p194
        $region42: #{tpu_custom_call.1} parent=31 // pred_check_branch
          %335 = sbr.rel (%p333) target = $region44
        $region43: #{tpu_custom_call.1} parent=31 // pred_region
          %s336 = sand.u32 %s19, 1
          %s337 = scalar_lea.sflag [#allocation5], %s336
          %s338 = sand.u32 %s184, 1
          %s339 = smul.addr %s338, 64
          %s340 = scalar_lea.vmem [#allocation10], %s339
          %342 = vsyncadd %s337, 0
          %s343 = smul.addr %s26, 16
          %s344 = smul.addr %s343, 4
          %s345 = scalar_lea.hbm %s6, %s344
          %s346 = sshll.u32 %s345, 4
          %s347 = int_to_ptr.hbm [resolvable:$true] %s346
          %s348 = sshll.u32 %s340, 4
          %s349 = int_to_ptr.vmem [resolvable:$true] %s348
          %354 = dma.hbm_to_vmem [thread:$0]  %s347, 1024, %s349, %s337, 64, 64, 4
        $region44: #{tpu_custom_call.1} parent=31 // pred_fallthru
          _
        // Predicated region
        $region45: #{tpu_custom_call.1} parent=31 // pred_check
          %p355 = pneg %p220
        $region46: #{tpu_custom_call.1} parent=31 // pred_check_branch
          %357 = sbr.rel (%p355) target = $region48
        $region47: #{tpu_custom_call.1} parent=31 // pred_region
          %p358 = scmp.lt.s32.totalorder %s26, 1
          %s359 = scalar_select %p358, %s26, 1
          %s360 = scalar_lea.vmem %s7, %s359
        $region48: #{tpu_custom_call.1} parent=31 // pred_fallthru
          _
      $region32: #{tpu_custom_call.1} parent=5 // pred_fallthru
        _
      %p361 = scmp.le.s32.totalorder 1, %s19
      %p362 = scmp.lt.s32.totalorder %s19, 3
      %p363 = pnand %p361, %p362
      %p364 = pneg %p363
      // Predicated region
      $region49: #{tpu_custom_call.1} parent=5 // pred_check
        _
      $region50: #{tpu_custom_call.1} parent=5 // pred_check_branch
        %366 = sbr.rel (%p363) target = $region52
      $region51: #{tpu_custom_call.1} parent=5 // pred_region
        %s367 = ssub.s32 %s19, 1
        // Predicated region
        $region53: #{tpu_custom_call.1} parent=51 // pred_check
          %p368 = pneg %p73
        $region54: #{tpu_custom_call.1} parent=51 // pred_check_branch
          %370 = sbr.rel (%p368) target = $region56
        $region55: #{tpu_custom_call.1} parent=51 // pred_region
          %372 = dma.done [#allocation5], 16
        $region56: #{tpu_custom_call.1} parent=51 // pred_fallthru
          _
        // Predicated region
        $region57: #{tpu_custom_call.1} parent=51 // pred_check
          %p373 = pneg %p120
        $region58: #{tpu_custom_call.1} parent=51 // pred_check_branch
          %375 = sbr.rel (%p373) target = $region60
        $region59: #{tpu_custom_call.1} parent=51 // pred_region
          %377 = dma.done [#allocation8], 128
        $region60: #{tpu_custom_call.1} parent=51 // pred_fallthru
          _
        %s378 = sand.u32 %s24, 1
        %s379 = scalar_lea.sflag [#allocation5], %s378
        %s380 = sand.u32 %s135, 1
        %s381 = smul.addr %s380, 32
        %s382 = scalar_lea.vmem [#allocation9], %s381
        // Predicated region
        $region61: #{tpu_custom_call.1} parent=51 // pred_check
          %p383 = pneg %p148
        $region62: #{tpu_custom_call.1} parent=51 // pred_check_branch
          %385 = sbr.rel (%p383) target = $region64
        $region63: #{tpu_custom_call.1} parent=51 // pred_region
          %387 = dma.done %s379, 512
        $region64: #{tpu_custom_call.1} parent=51 // pred_fallthru
          _
        %s388 = sand.u32 %s24, 1
        %s389 = scalar_lea.sflag [#allocation5], %s388
        %s390 = sand.u32 %s187, 1
        %s391 = smul.addr %s390, 64
        %s392 = scalar_lea.vmem [#allocation10], %s391
        // Predicated region
        $region65: #{tpu_custom_call.1} parent=51 // pred_check
          %p393 = pneg %p200
        $region66: #{tpu_custom_call.1} parent=51 // pred_check_branch
          %395 = sbr.rel (%p393) target = $region68
        $region67: #{tpu_custom_call.1} parent=51 // pred_region
          %397 = dma.done %s389, 1024
        $region68: #{tpu_custom_call.1} parent=51 // pred_fallthru
          _
        %p398 = pneg %p52
        %p399 = pneg %p49
        %p400 = pneg %p73
        %p401 = pneg %p70
        %p402 = pneg %p94
        %p403 = pneg %p91
        %p404 = pneg %p120
        %p405 = pneg %p117
        %s406 = sand.u32 %s24, 1
        %s407 = scalar_lea.sflag [#allocation5], %s406
        %s408 = sand.u32 %s135, 1
        %s409 = smul.addr %s408, 32
        %s410 = scalar_lea.vmem [#allocation9], %s409
        %p411 = pneg %p148
        %p412 = pneg %p145
        %p413 = scmp.lt.s32.totalorder %s28, 1
        %s414 = scalar_select %p413, %s28, 1
        %s415 = scalar_lea.vmem %s5, %s414
        %p416 = pneg %p174
        %p417 = pneg %p171
        %s418 = sand.u32 %s24, 1
        %s419 = scalar_lea.sflag [#allocation5], %s418
        %s420 = sand.u32 %s187, 1
        %s421 = smul.addr %s420, 64
        %s422 = scalar_lea.vmem [#allocation10], %s421
        %p423 = pneg %p200
        %p424 = pneg %p197
        %p425 = scmp.lt.s32.totalorder %s28, 1
        %s426 = scalar_select %p425, %s28, 1
        %s427 = scalar_lea.vmem %s7, %s426
        %p428 = pneg %p226
        %p429 = pneg %p223
        %p430 = pneg %p252
        %p431 = pneg %p249
        %s432 = sand.u32 %s239, 1
        %s433 = scalar_lea.sflag [#allocation6], %s432
        %s434 = sand.u32 %s239, 1
        %s435 = smul.addr %s434, 8
        %s436 = scalar_lea.vmem [#allocation11], %s435
        %s437 = smul.u32 8, %s29
        %p438 = scmp.lt.s32.totalorder %s28, 1
        %s439 = scalar_select %p438, %s28, 1
        %s440 = scalar_lea.vmem %s5, %s439
        %p441 = scmp.lt.s32.totalorder %s28, 1
        %s442 = scalar_select %p441, %s28, 1
        %s443 = scalar_lea.vmem %s7, %s442
        %p445 = scmp.eq.s32.totalorder %s29, 0
        // Predicated region
        $region69: #{tpu_custom_call.1} parent=51 // pred_check
          %p446 = pneg %p445
        $region70: #{tpu_custom_call.1} parent=51 // pred_check_branch
          %448 = sbr.rel (%p446) target = $region72
        $region71: #{tpu_custom_call.1} parent=51 // pred_region
          %449 = vst [vmem:[#allocation2] sm:$0xff] 0.0
        $region72: #{tpu_custom_call.1} parent=51 // pred_fallthru
          _
        %v450 = vld [vmem:[#allocation7] sm:$0xff]
        %v451 = vld [vmem:[#allocation2] sm:$0xff]
        %v452 = vpack.c.bf16 %v450, %v450
        %v453 = vld [vmem:[%s382] sm:$0xf]
        %v454 = vld [vmem:[%s382 + $0x4] sm:$0xf]
        %v455 = vld [vmem:[%s382 + $0x8] sm:$0xf]
        %v456 = vld [vmem:[%s382 + $0xc] sm:$0xf]
        %v457 = vld [vmem:[%s382 + $0x10] sm:$0xf]
        %v458 = vld [vmem:[%s382 + $0x14] sm:$0xf]
        %v459 = vld [vmem:[%s382 + $0x18] sm:$0xf]
        %v460 = vld [vmem:[%s382 + $0x1c] sm:$0xf]
        %v469 = vunpack.c.l.b16 %v453
        %v470 = vunpack.c.l.b16 %v454
        %v471 = vunpack.c.l.b16 %v455
        %v472 = vunpack.c.l.b16 %v456
        %v473 = vunpack.c.l.b16 %v457
        %v474 = vunpack.c.l.b16 %v458
        %v475 = vunpack.c.l.b16 %v459
        %v476 = vunpack.c.l.b16 %v460
        %v477 = vpack.c.b16 %v470, %v469
        %v478 = vpack.c.b16 %v472, %v471
        %v479 = vpack.c.b16 %v474, %v473
        %v480 = vpack.c.b16 %v476, %v475
        %vm485 = vcmask 523264
        %v487 = vsel %vm485, %v452, 0
        %489 = vmatpush.bf16.msra.mxu0 0
        %490 = vmatpush.bf16.msra.mxu0 0
        %491 = vmatpush.bf16.msra.mxu0 0
        %492 = vmatpush.bf16.msra.mxu0 0
        %493 = vmatpush.bf16.msra.mxu0 %v480
        %494 = vmatpush.bf16.msra.mxu0 %v479
        %495 = vmatpush.bf16.msra.mxu0 %v478
        %496 = vmatpush.bf16.msra.mxu0 %v477
        %497 = vmatmul.bf16.gmra.mxu0 %v487
        %v498 = vpop.f32.mrf.mxu0
        %v499 = vadd.f32 0.0, %v498
        %v500 = vpop.f32.mrf.mxu0
        %501 = vdwg.mxu0
        %v502 = vadd.f32 %v451, %v499
        %503 = vst [vmem:[#allocation2] sm:$0xff] %v502
        %p504 = scmp.eq.s32.totalorder %s28, 0
        // Predicated region
        $region73: #{tpu_custom_call.1} parent=51 // pred_check
          %p505 = pneg %p504
        $region74: #{tpu_custom_call.1} parent=51 // pred_check_branch
          %507 = sbr.rel (%p505) target = $region76
        $region75: #{tpu_custom_call.1} parent=51 // pred_region
          // Predicated region
          $region77: #{tpu_custom_call.1} parent=75 // pred_check
            %p508 = pneg %p445
          $region78: #{tpu_custom_call.1} parent=75 // pred_check_branch
            %510 = sbr.rel (%p508) target = $region80
          $region79: #{tpu_custom_call.1} parent=75 // pred_region
            %vm511 = vcmask 64512
            %512 = vst.msk [vmem:[#allocation3] sm:$0xff] %vm511, 0.0
          $region80: #{tpu_custom_call.1} parent=75 // pred_fallthru
            _
          %v513 = vld [vmem:[#allocation3] sm:$0xff]
          %v515 = vsel %vm485, %v450, 0
          %517 = vmatpush.xpose.msra.mxu0 0.0
          %518 = vmatpush.xpose.msra.mxu0 0.0
          %519 = vmatpush.xpose.msra.mxu0 0.0
          %520 = vmatpush.xpose.msra.mxu0 0.0
          %521 = vmatpush.xpose.msra.mxu0 0.0
          %522 = vmatpush.xpose.msra.mxu0 0.0
          %523 = vmatpush.xpose.msra.mxu0 0.0
          %524 = vmatpush.xpose.msra.mxu0 0.0
          %525 = vmatpush.xpose.msra.mxu0 0.0
          %526 = vmatpush.xpose.msra.mxu0 0.0
          %527 = vmatpush.xpose.msra.mxu0 0.0
          %528 = vmatpush.xpose.msra.mxu0 0.0
          %529 = vmatpush.xpose.msra.mxu0 0.0
          %530 = vmatpush.xpose.msra.mxu0 0.0
          %531 = vmatpush.xpose.msra.mxu0 0.0
          %532 = vmatpush.xpose.msra.mxu0 %v515
          %533 = vmatmul.f32.gmra.mxu0 %v515
          %v534 = vpop.f32.mrf.mxu0
          %v535 = vadd.f32 0.0, %v534
          %536 = vdwg.mxu0
          %v537 = vadd.f32 %v513, %v535
          %vm538 = vcmask 64512
          %539 = vst.msk [vmem:[#allocation3] sm:$0xff] %vm538, %v537
        $region76: #{tpu_custom_call.1} parent=51 // pred_fallthru
          _
        // Predicated region
        $region81: #{tpu_custom_call.1} parent=51 // pred_check
          %p540 = pneg %p445
        $region82: #{tpu_custom_call.1} parent=51 // pred_check_branch
          %542 = sbr.rel (%p540) target = $region84
        $region83: #{tpu_custom_call.1} parent=51 // pred_region
          %v543 = vlaneseq
          %v544 = vshrl.u32 %v543, 7
          %v545 = vlaneseq
          %v546 = vand.u32 %v545, 127
          %vm547 = vcmp.eq.s32.totalorder %v544, %v546
          %v548 = vld [vmem:[%s0] sm:$0xff]
          %v549 = vld [vmem:[#allocation4] sm:$0x1]
          %550 = vset.pattern.permute.xlu0 0
          %551 = vperm.xlu0 %550, %v548
          %v552 = vpop.permute.xlu0 %551
          %v553 = vperm.slane %v549, 0
          %vm554 = vcmp.eq.s32.totalorder %v552, %v553
          %vm555 = vmxor %vm547, 1
          %vm556 = vmand %vm554, %vm555
          %vm557 = vmxor %vm554, 1
          %v558 = vld [vmem:[%s2] sm:$0xff]
          %v559 = vmul.f32 %v558, %v558
          %vm560 = vcmask 261120
          %v561 = vsel %vm560, %v559, 0.0
          %562 = vadd.xlane.f32.xlu0 %v561
          %v563 = vpop.xlane.xlu0 %562
          %v564 = vmax.f32 %v563, 1e-24
          %v565 = vrsqrt.pop %v564
          %v566 = vmul.f32 %v565, %v564
          %v567 = vmul.f32 %v566, %v565
          %v568 = vmul.f32 0.5, %v567
          %v569 = vsub.f32 1.5, %v568
          %v570 = vmul.f32 %v565, %v569
          %vm571 = vweird.f32 %v564
          %vm572 = vweird.f32 %v565
          %vm573 = vmor %vm571, %vm572
          %v574 = vsel %vm573, %v565, %v570
          %v575 = vmul.f32 %v558, %v574
          %v577 = vsel %vm560, %v575, 0
          %579 = vmatpush.xpose.msra.mxu0 0.0
          %580 = vmatpush.xpose.msra.mxu0 0.0
          %581 = vmatpush.xpose.msra.mxu0 0.0
          %582 = vmatpush.xpose.msra.mxu0 0.0
          %583 = vmatpush.xpose.msra.mxu0 0.0
          %584 = vmatpush.xpose.msra.mxu0 0.0
          %585 = vmatpush.xpose.msra.mxu0 0.0
          %586 = vmatpush.xpose.msra.mxu0 0.0
          %587 = vmatpush.xpose.msra.mxu0 0.0
          %588 = vmatpush.xpose.msra.mxu0 0.0
          %589 = vmatpush.xpose.msra.mxu0 0.0
          %590 = vmatpush.xpose.msra.mxu0 0.0
          %591 = vmatpush.xpose.msra.mxu0 0.0
          %592 = vmatpush.xpose.msra.mxu0 0.0
          %593 = vmatpush.xpose.msra.mxu0 0.0
          %594 = vmatpush.xpose.msra.mxu0 %v577
          %595 = vmatmul.f32.gmra.mxu0 %v577
          %v596 = vpop.f32.mrf.mxu0
          %v597 = vadd.f32 0.0, %v596
          %598 = vdwg.mxu0
          %v599 = vsel %vm556, %v597, 1e+30
          %vm600 = vcmask 64512
          %v601 = vsel %vm600, %v599, inf
          %602 = vmin.xlane.f32.xlu0 %v601
          %v603 = vpop.xlane.xlu0 %602
          %v604 = vsel %vm557, %v597, -1e+30
          %v605 = vsel %vm600, %v604, -inf
          %606 = vmax.xlane.f32.xlu0 %v605
          %v607 = vpop.xlane.xlu0 %606
          %v608 = vadd.f32 %v597, 0.1
          %vm609 = vcmp.gt.f32.partialorder %v608, %v603
          %vm610 = vmand %vm557, %vm609
          %v611 = vsub.f32 %v597, 0.1
          %vm612 = vcmp.lt.f32.partialorder %v611, %v607
          %vm613 = vmand %vm556, %vm612
          %v614 = vsub.f32 %v597, 0.5
          %v615 = vmul.f32 %v614, -2.0
          %v616 = vmul.f32 %v615, 1.442695
          %v617 = vpow.pop %v616
          %v618 = vsel %vm613, %v617, 0.0
          %v619 = vmul.f32 %v614, 40.0
          %v620 = vmul.f32 %v619, 1.442695
          %v621 = vpow.pop %v620
          %v622 = vsel %vm610, %v621, 0.0
          %v623 = vsel %vm600, %v618, 0.0
          %624 = vadd.xlane.f32.xlu0 %v623
          %v625 = vpop.xlane.xlu0 %624
          %v626 = vadd.f32 %v625, 1.0
          %v627 = vlog2.pop %v626
          %v628 = vmul.f32 %v627, 0.6931472
          %v629 = vrcp.pop 2.0
          %v630 = vmul.f32 2.0, %v629
          %v631 = vsub.f32 1.0, %v630
          %v632 = vmul.f32 %v629, %v631
          %v633 = vadd.f32 %v629, %v632
          %vm634 = vweird.f32 %v629
          %v635 = vsel %vm634, %v629, %v633
          %v636 = vmul.f32 %v628, %v635
          %v637 = vsel %vm600, %v622, 0.0
          %638 = vadd.xlane.f32.xlu0 %v637
          %v639 = vpop.xlane.xlu0 %638
          %v640 = vadd.f32 %v639, 1.0
          %v641 = vlog2.pop %v640
          %v642 = vmul.f32 %v641, 0.6931472
          %v643 = vrcp.pop 40.0
          %v644 = vmul.f32 40.0, %v643
          %v645 = vsub.f32 1.0, %v644
          %v646 = vmul.f32 %v643, %v645
          %v647 = vadd.f32 %v643, %v646
          %vm648 = vweird.f32 %v643
          %v649 = vsel %vm648, %v643, %v647
          %v650 = vmul.f32 %v642, %v649
          %v651 = vsel %vm613, 1, 0
          %v652 = vcvt.s32.f32 %v651
          %v653 = vsel %vm600, %v652, 0.0
          %654 = vadd.xlane.f32.xlu0 %v653
          %v655 = vpop.xlane.xlu0 %654
          %vm656 = vcmp.gt.f32.partialorder %v655, 0.0
          %v657 = vsel %vm610, 1, 0
          %v658 = vcvt.s32.f32 %v657
          %v659 = vsel %vm600, %v658, 0.0
          %660 = vadd.xlane.f32.xlu0 %v659
          %v661 = vpop.xlane.xlu0 %660
          %vm662 = vcmp.gt.f32.partialorder %v661, 0.0
          %vm663 = vmand %vm656, %vm662
          %v664 = vsel %vm663, 1, 0
          %v665 = vcvt.s32.f32 %v664
          %v666 = vadd.f32 %v636, %v650
          %v667 = vmul.f32 %v665, %v666
          %v668 = vadd.f32 %v667, 0.0
          %v669 = vrot.slane %v668, 4
          %v670 = vadd.f32 %v668, %v669
          %v671 = vrot.slane %v670, 2
          %v672 = vadd.f32 %v670, %v671
          %v673 = vrot.slane %v672, 1
          %v674 = vadd.f32 %v672, %v673
          %v675 = vadd.f32 %v665, 0.0
          %v676 = vrot.slane %v675, 4
          %v677 = vadd.f32 %v675, %v676
          %v678 = vrot.slane %v677, 2
          %v679 = vadd.f32 %v677, %v678
          %v680 = vrot.slane %v679, 1
          %v681 = vadd.f32 %v679, %v680
          %vm682 = vcmp.gt.f32.partialorder %v681, 0.0
          %v683 = vmax.f32 %v681, 1.0
          %v684 = vrcp.pop %v683
          %v685 = vmul.f32 %v683, %v684
          %v686 = vsub.f32 1.0, %v685
          %v687 = vmul.f32 %v684, %v686
          %v688 = vadd.f32 %v684, %v687
          %vm689 = vweird.f32 %v683
          %vm690 = vweird.f32 %v684
          %vm691 = vmor %vm689, %vm690
          %v692 = vsel %vm691, %v684, %v688
          %v693 = vand.u32 2147483647, %v683
          %vm694 = vcmp.eq.f32.partialorder %v693, 8.507059e+37
          %v695 = vand.u32 %v683, 2147483648
          %v696 = vor.u32 1.1754944e-38, %v695
          %v697 = vsel %vm694, %v696, %v692
          %v698 = vmul.f32 %v674, %v697
          %v699 = vsel %vm682, %v698, 0.0
          %v700 = vsel %vm600, %v597, -inf
          %701 = vmax.xlane.f32.xlu0 %v700
          %v702 = vpop.xlane.xlu0 %701
          %v703 = vsub.f32 %v597, %v702
          %v704 = vmul.f32 %v703, 1.442695
          %v705 = vpow.pop %v704
          %v706 = vsel %vm600, %v705, 0.0
          %707 = vadd.xlane.f32.xlu0 %v706
          %v708 = vpop.xlane.xlu0 %707
          %v709 = vlog2.pop %v708
          %v710 = vmul.f32 %v709, 0.6931472
          %v711 = vsub.f32 %v703, %v710
          %v712 = vld [vmem:[#allocation2] sm:$0xff]
          %v713 = vld [vmem:[%s440] sm:$0x1]
          %v715 = vperm.slane %v713, 0
          %v717 = vadd.f32 %v712, %v715
          %v718 = vmax.f32 %v717, 0.0
          %v719 = vpack.c.bf16 %v718, %v718
          %v720 = vld [vmem:[%s392] sm:$0xf]
          %v721 = vld [vmem:[%s392 + $0x4] sm:$0xf]
          %v722 = vld [vmem:[%s392 + $0x8] sm:$0xf]
          %v723 = vld [vmem:[%s392 + $0xc] sm:$0xf]
          %v724 = vld [vmem:[%s392 + $0x10] sm:$0xf]
          %v725 = vld [vmem:[%s392 + $0x14] sm:$0xf]
          %v726 = vld [vmem:[%s392 + $0x18] sm:$0xf]
          %v727 = vld [vmem:[%s392 + $0x1c] sm:$0xf]
          %v728 = vld [vmem:[%s392 + $0x20] sm:$0xf]
          %v729 = vld [vmem:[%s392 + $0x24] sm:$0xf]
          %v730 = vld [vmem:[%s392 + $0x28] sm:$0xf]
          %v731 = vld [vmem:[%s392 + $0x2c] sm:$0xf]
          %v732 = vld [vmem:[%s392 + $0x30] sm:$0xf]
          %v733 = vld [vmem:[%s392 + $0x34] sm:$0xf]
          %v734 = vld [vmem:[%s392 + $0x38] sm:$0xf]
          %v735 = vld [vmem:[%s392 + $0x3c] sm:$0xf]
          %v736 = vld [vmem:[%s443] sm:$0x1]
          %v738 = vperm.slane %v736, 0
          %v756 = vunpack.c.l.b16 %v720
          %v757 = vunpack.c.l.b16 %v721
          %v758 = vunpack.c.l.b16 %v722
          %v759 = vunpack.c.l.b16 %v723
          %v760 = vunpack.c.l.b16 %v724
          %v761 = vunpack.c.l.b16 %v725
          %v762 = vunpack.c.l.b16 %v726
          %v763 = vunpack.c.l.b16 %v727
          %v764 = vunpack.c.l.b16 %v728
          %v765 = vunpack.c.l.b16 %v729
          %v766 = vunpack.c.l.b16 %v730
          %v767 = vunpack.c.l.b16 %v731
          %v768 = vunpack.c.l.b16 %v732
          %v769 = vunpack.c.l.b16 %v733
          %v770 = vunpack.c.l.b16 %v734
          %v771 = vunpack.c.l.b16 %v735
          %v772 = vpack.c.b16 %v757, %v756
          %v773 = vpack.c.b16 %v759, %v758
          %v774 = vpack.c.b16 %v761, %v760
          %v775 = vpack.c.b16 %v763, %v762
          %v776 = vpack.c.b16 %v765, %v764
          %v777 = vpack.c.b16 %v767, %v766
          %v778 = vpack.c.b16 %v769, %v768
          %v779 = vpack.c.b16 %v771, %v770
          %788 = vmatpush.bf16.msra.mxu0 %v779
          %789 = vmatpush.bf16.msra.mxu0 %v778
          %790 = vmatpush.bf16.msra.mxu0 %v777
          %791 = vmatpush.bf16.msra.mxu0 %v776
          %792 = vmatpush.bf16.msra.mxu0 %v775
          %793 = vmatpush.bf16.msra.mxu0 %v774
          %794 = vmatpush.bf16.msra.mxu0 %v773
          %795 = vmatpush.bf16.msra.mxu0 %v772
          %796 = vmatmul.bf16.gmra.mxu0 %v719
          %v797 = vpop.f32.mrf.mxu0
          %v798 = vadd.f32 %v738, %v797
          %v799 = vpop.f32.mrf.mxu0
          %800 = vdwg.mxu0
          %v801 = vmul.f32 %v798, %v798
          %802 = vadd.xlane.f32.xlu0 %v801
          %v803 = vpop.xlane.xlu0 %802
          %v804 = vmax.f32 %v803, 1e-24
          %v805 = vrsqrt.pop %v804
          %v806 = vmul.f32 %v805, %v804
          %v807 = vmul.f32 %v806, %v805
          %v808 = vmul.f32 0.5, %v807
          %v809 = vsub.f32 1.5, %v808
          %v810 = vmul.f32 %v805, %v809
          %vm811 = vweird.f32 %v804
          %vm812 = vweird.f32 %v805
          %vm813 = vmor %vm811, %vm812
          %v814 = vsel %vm813, %v805, %v810
          %v815 = vmul.f32 %v798, %v814
          %816 = vmatpush.xpose.msra.mxu0 0.0
          %817 = vmatpush.xpose.msra.mxu0 0.0
          %818 = vmatpush.xpose.msra.mxu0 0.0
          %819 = vmatpush.xpose.msra.mxu0 0.0
          %820 = vmatpush.xpose.msra.mxu0 0.0
          %821 = vmatpush.xpose.msra.mxu0 0.0
          %822 = vmatpush.xpose.msra.mxu0 0.0
          %823 = vmatpush.xpose.msra.mxu0 0.0
          %824 = vmatpush.xpose.msra.mxu0 0.0
          %825 = vmatpush.xpose.msra.mxu0 0.0
          %826 = vmatpush.xpose.msra.mxu0 0.0
          %827 = vmatpush.xpose.msra.mxu0 0.0
          %828 = vmatpush.xpose.msra.mxu0 0.0
          %829 = vmatpush.xpose.msra.mxu0 0.0
          %830 = vmatpush.xpose.msra.mxu0 0.0
          %831 = vmatpush.xpose.msra.mxu0 %v815
          %832 = vmatmul.f32.gmra.mxu0 %v815
          %v833 = vpop.f32.mrf.mxu0
          %v834 = vadd.f32 0.0, %v833
          %835 = vdwg.mxu0
          %v836 = vsel %vm556, %v834, 1e+30
          %v837 = vsel %vm600, %v836, inf
          %838 = vmin.xlane.f32.xlu0 %v837
          %v839 = vpop.xlane.xlu0 %838
          %v840 = vsel %vm557, %v834, -1e+30
          %v841 = vsel %vm600, %v840, -inf
          %842 = vmax.xlane.f32.xlu0 %v841
          %v843 = vpop.xlane.xlu0 %842
          %v844 = vadd.f32 %v834, 0.1
          %vm845 = vcmp.gt.f32.partialorder %v844, %v839
          %vm846 = vmand %vm557, %vm845
          %v847 = vsub.f32 %v834, 0.1
          %vm848 = vcmp.lt.f32.partialorder %v847, %v843
          %vm849 = vmand %vm556, %vm848
          %v850 = vsub.f32 %v834, 0.5
          %v851 = vmul.f32 %v850, -2.0
          %v852 = vmul.f32 %v851, 1.442695
          %v853 = vpow.pop %v852
          %v854 = vsel %vm849, %v853, 0.0
          %v855 = vmul.f32 %v850, 40.0
          %v856 = vmul.f32 %v855, 1.442695
          %v857 = vpow.pop %v856
          %v858 = vsel %vm846, %v857, 0.0
          %v859 = vsel %vm600, %v854, 0.0
          %860 = vadd.xlane.f32.xlu0 %v859
          %v861 = vpop.xlane.xlu0 %860
          %v862 = vadd.f32 %v861, 1.0
          %v863 = vlog2.pop %v862
          %v864 = vmul.f32 %v863, 0.6931472
          %v865 = vmul.f32 %v864, %v635
          %v866 = vsel %vm600, %v858, 0.0
          %867 = vadd.xlane.f32.xlu0 %v866
          %v868 = vpop.xlane.xlu0 %867
          %v869 = vadd.f32 %v868, 1.0
          %v870 = vlog2.pop %v869
          %v871 = vmul.f32 %v870, 0.6931472
          %v872 = vmul.f32 %v871, %v649
          %v873 = vsel %vm849, 1, 0
          %v874 = vcvt.s32.f32 %v873
          %v875 = vsel %vm600, %v874, 0.0
          %876 = vadd.xlane.f32.xlu0 %v875
          %v877 = vpop.xlane.xlu0 %876
          %vm878 = vcmp.gt.f32.partialorder %v877, 0.0
          %v879 = vsel %vm846, 1, 0
          %v880 = vcvt.s32.f32 %v879
          %v881 = vsel %vm600, %v880, 0.0
          %882 = vadd.xlane.f32.xlu0 %v881
          %v883 = vpop.xlane.xlu0 %882
          %vm884 = vcmp.gt.f32.partialorder %v883, 0.0
          %vm885 = vmand %vm878, %vm884
          %v886 = vsel %vm885, 1, 0
          %v887 = vcvt.s32.f32 %v886
          %v888 = vadd.f32 %v865, %v872
          %v889 = vmul.f32 %v887, %v888
          %v890 = vadd.f32 %v889, 0.0
          %v891 = vrot.slane %v890, 4
          %v892 = vadd.f32 %v890, %v891
          %v893 = vrot.slane %v892, 2
          %v894 = vadd.f32 %v892, %v893
          %v895 = vrot.slane %v894, 1
          %v896 = vadd.f32 %v894, %v895
          %v897 = vadd.f32 %v887, 0.0
          %v898 = vrot.slane %v897, 4
          %v899 = vadd.f32 %v897, %v898
          %v900 = vrot.slane %v899, 2
          %v901 = vadd.f32 %v899, %v900
          %v902 = vrot.slane %v901, 1
          %v903 = vadd.f32 %v901, %v902
          %vm904 = vcmp.gt.f32.partialorder %v903, 0.0
          %v905 = vmax.f32 %v903, 1.0
          %v906 = vrcp.pop %v905
          %v907 = vmul.f32 %v905, %v906
          %v908 = vsub.f32 1.0, %v907
          %v909 = vmul.f32 %v906, %v908
          %v910 = vadd.f32 %v906, %v909
          %vm911 = vweird.f32 %v905
          %vm912 = vweird.f32 %v906
          %vm913 = vmor %vm911, %vm912
          %v914 = vsel %vm913, %v906, %v910
          %v915 = vand.u32 2147483647, %v905
          %vm916 = vcmp.eq.f32.partialorder %v915, 8.507059e+37
          %v917 = vand.u32 %v905, 2147483648
          %v918 = vor.u32 1.1754944e-38, %v917
          %v919 = vsel %vm916, %v918, %v914
          %v920 = vmul.f32 %v896, %v919
          %v921 = vsel %vm904, %v920, 0.0
          %v922 = vsel %vm600, %v834, -inf
          %923 = vmax.xlane.f32.xlu0 %v922
          %v924 = vpop.xlane.xlu0 %923
          %v925 = vsub.f32 %v834, %v924
          %v926 = vmul.f32 %v925, 1.442695
          %v927 = vpow.pop %v926
          %v928 = vsel %vm600, %v927, 0.0
          %929 = vadd.xlane.f32.xlu0 %v928
          %v930 = vpop.xlane.xlu0 %929
          %v931 = vlog2.pop %v930
          %v932 = vmul.f32 %v931, 0.6931472
          %v933 = vsub.f32 %v925, %v932
          %v934 = vmul.f32 %v933, 1.442695
          %v935 = vpow.pop %v934
          %v936 = vsub.f32 %v933, %v711
          %v937 = vmul.f32 %v935, %v936
          %v938 = vsel %vm600, %v937, 0.0
          %939 = vadd.xlane.f32.xlu0 %v938
          %v940 = vpop.xlane.xlu0 %939
          %v941 = vrot.slane %v940, 4
          %v942 = vadd.f32 %v940, %v941
          %v943 = vrot.slane %v942, 2
          %v944 = vadd.f32 %v942, %v943
          %v945 = vrot.slane %v944, 1
          %v946 = vadd.f32 %v944, %v945
          %v947 = vrcp.pop 8.0
          %v948 = vmul.f32 8.0, %v947
          %v949 = vsub.f32 1.0, %v948
          %v950 = vmul.f32 %v947, %v949
          %v951 = vadd.f32 %v947, %v950
          %vm952 = vweird.f32 %v947
          %v953 = vsel %vm952, %v947, %v951
          %v954 = vmul.f32 %v946, %v953
          %vm955 = vcmp.eq.s32.totalorder %v546, 0
          %v956 = vsel %vm955, %v921, 0.0
          %vm957 = vcmp.eq.s32.totalorder %v546, 1
          %v958 = vsel %vm957, %v954, 0.0
          %v959 = vadd.f32 %v956, %v958
          %vm960 = vcmp.eq.s32.totalorder %v546, 2
          %v961 = vsel %vm960, %v699, 0.0
          %v962 = vadd.f32 %v959, %v961
          %963 = vst [vmem:[%s436] sm:$0xff] %v962
          // Predicated region
          $region85: #{tpu_custom_call.1} parent=83 // pred_check
            %p964 = pneg %p504
          $region86: #{tpu_custom_call.1} parent=83 // pred_check_branch
            %966 = sbr.rel (%p964) target = $region88
          $region87: #{tpu_custom_call.1} parent=83 // pred_region
            %v967 = vld [vmem:[#allocation3] sm:$0xff]
            %v968 = vsel %vm547, %v967, 0.0
            %v969 = vsel %vm600, %v968, 0.0
            %970 = vadd.xlane.f32.xlu0 %v969
            %v971 = vpop.xlane.xlu0 %970
            %v972 = vrot.slane %v969, 4
            %v973 = vadd.f32 %v969, %v972
            %v974 = vrot.slane %v973, 2
            %v975 = vadd.f32 %v973, %v974
            %v976 = vrot.slane %v975, 1
            %v977 = vadd.f32 %v975, %v976
            %v978 = vmax.f32 %v971, 1e-24
            %v979 = vrsqrt.pop %v978
            %v980 = vmul.f32 %v979, %v978
            %v981 = vmul.f32 %v980, %v979
            %v982 = vmul.f32 0.5, %v981
            %v983 = vsub.f32 1.5, %v982
            %v984 = vmul.f32 %v979, %v983
            %vm985 = vweird.f32 %v978
            %vm986 = vweird.f32 %v979
            %vm987 = vmor %vm985, %vm986
            %v988 = vsel %vm987, %v979, %v984
            %v989 = vmax.f32 %v977, 1e-24
            %v990 = vrsqrt.pop %v989
            %v991 = vmul.f32 %v990, %v989
            %v992 = vmul.f32 %v991, %v990
            %v993 = vmul.f32 0.5, %v992
            %v994 = vsub.f32 1.5, %v993
            %v995 = vmul.f32 %v990, %v994
            %vm996 = vweird.f32 %v989
            %vm997 = vweird.f32 %v990
            %vm998 = vmor %vm996, %vm997
            %v999 = vsel %vm998, %v990, %v995
            %v1000 = vmul.f32 %v967, %v988
            %v1001 = vmul.f32 %v1000, %v999
            %v1002 = vsel %vm600, %v1001, -inf
            %1003 = vmax.xlane.f32.xlu0 %v1002
            %v1004 = vpop.xlane.xlu0 %1003
            %v1005 = vsub.f32 %v1001, %v1004
            %v1006 = vmul.f32 %v1005, 1.442695
            %v1007 = vpow.pop %v1006
            %v1008 = vsel %vm600, %v1007, 0.0
            %1009 = vadd.xlane.f32.xlu0 %v1008
            %v1010 = vpop.xlane.xlu0 %1009
            %v1011 = vlog2.pop %v1010
            %v1012 = vmul.f32 %v1011, 0.6931472
            %v1013 = vsub.f32 %v1005, %v1012
            %v1014 = vmul.f32 %v1013, 1.442695
            %v1015 = vpow.pop %v1014
            %v1016 = vsub.f32 %v1013, %v711
            %v1017 = vmul.f32 %v1015, %v1016
            %v1018 = vsel %vm600, %v1017, 0.0
            %1019 = vadd.xlane.f32.xlu0 %v1018
            %v1020 = vpop.xlane.xlu0 %1019
            %v1021 = vrot.slane %v1020, 4
            %v1022 = vadd.f32 %v1020, %v1021
            %v1023 = vrot.slane %v1022, 2
            %v1024 = vadd.f32 %v1022, %v1023
            %v1025 = vrot.slane %v1024, 1
            %v1026 = vadd.f32 %v1024, %v1025
            %v1027 = vmul.f32 %v1026, %v953
            %vm1028 = vcmp.eq.s32.totalorder %v546, 3
            %v1029 = vsel %vm1028, %v1027, 0.0
            %v1030 = vadd.f32 %v962, %v1029
            %1031 = vst [vmem:[%s436] sm:$0xff] %v1030
          $region88: #{tpu_custom_call.1} parent=83 // pred_fallthru
            _
        $region84: #{tpu_custom_call.1} parent=51 // pred_fallthru
          _
        %s1032 = sand.u32 %s239, 1
        %s1033 = scalar_lea.sflag [#allocation6], %s1032
        %s1034 = sand.u32 %s239, 1
        %s1035 = smul.addr %s1034, 8
        %s1036 = scalar_lea.vmem [#allocation11], %s1035
        // Predicated region
        $region89: #{tpu_custom_call.1} parent=51 // pred_check
          %p1037 = pneg %p249
        $region90: #{tpu_custom_call.1} parent=51 // pred_check_branch
          %1039 = sbr.rel (%p1037) target = $region92
        $region91: #{tpu_custom_call.1} parent=51 // pred_region
          %1041 = vsyncadd %s1033, 0
          %s1042 = smul.addr %s28, 8
          %s1043 = scalar_lea.hbm %s8, %s1042
          %s1045 = sshll.u32 %s1036, 4
          %s1046 = int_to_ptr.vmem [resolvable:$true] %s1045
          %s1047 = sshll.u32 %s1043, 4
          %s1048 = int_to_ptr.hbm [resolvable:$true] %s1047
          %1050 = dma.vmem_to_hbm [thread:$0]  %s1046, 128, %s1048, %s1033
        $region92: #{tpu_custom_call.1} parent=51 // pred_fallthru
          _
      $region52: #{tpu_custom_call.1} parent=5 // pred_fallthru
        _
      %p1051 = scmp.le.s32.totalorder 2, %s19
      // Predicated region
      $region93: #{tpu_custom_call.1} parent=5 // pred_check
        %p1052 = pneg %p1051
      $region94: #{tpu_custom_call.1} parent=5 // pred_check_branch
        %1054 = sbr.rel (%p1052) target = $region96
      $region95: #{tpu_custom_call.1} parent=5 // pred_region
        %s1055 = ssub.s32 %s19, 2
        // Predicated region
        $region97: #{tpu_custom_call.1} parent=95 // pred_check
          %p1056 = pneg %p255
        $region98: #{tpu_custom_call.1} parent=95 // pred_check_branch
          %1058 = sbr.rel (%p1056) target = $region100
        $region99: #{tpu_custom_call.1} parent=95 // pred_region
          %s1059 = sand.u32 %s240, 1
          %s1060 = scalar_lea.sflag [#allocation6], %s1059
          %s1061 = sand.u32 %s240, 1
          %s1062 = smul.addr %s1061, 8
          %s1063 = scalar_lea.vmem [#allocation11], %s1062
          %1065 = dma.done %s1060, 128
        $region100: #{tpu_custom_call.1} parent=95 // pred_fallthru
          _
      $region96: #{tpu_custom_call.1} parent=5 // pred_fallthru
        _
    $region6: #{tpu_custom_call.1} parent=1 // loop_footer
      %s23 = sadd.s32 1, %s19
    $region7: #{tpu_custom_call.1} parent=1 // loop_footer_branch
      %18 = sbr.rel target = $region3
    $region8: #{tpu_custom_call.1} parent=1 // loop_exit
      _
    %1066 = vsyncpa [#allocation5], 1
    %s1067 = scalar_lea.sflag [#allocation5], 1
    %1068 = vsyncpa %s1067, 1
    %1069 = vsyncpa [#allocation8], 1
    %1070 = vsyncpa [#allocation6], 1
    %s1071 = scalar_lea.sflag [#allocation6], 1
    %1072 = vsyncpa %s1071, 1

</llo_original>
